<compile_context>
chip_gen: v7x
topology: tpu7x:2x2x1
jax: 0.10.0
libtpu: 0.0.40
codegen_flags: <defaults>
</compile_context>

<pallas_src>
import functools

import jax
import jax.numpy as jnp
from jax.experimental import pallas as pl
from jax.experimental.pallas import tpu as pltpu


def _symbolic_kan_kernel(x_ref, w_ref, k_ref, wt_ref, kbias_ref,
                         y_ref, post_ref, *, flatten_post):
    # x_ref:     (TB, I)   batch tile of inputs
    # w_ref:     (O, I)    folded weight  W = mask*c*a
    # k_ref:     (O, I)    folded offset  K = mask*(c*b + d)
    # wt_ref:    (I, O)    W.T for the MXU matmul
    # kbias_ref: (1, O)    sum_i K[j, i]
    # y_ref:     (TB, O)
    # post_ref:  (TB, O*I) if flatten_post else (TB, O, I)
    x = x_ref[...]                                           # (TB, I)
    w = w_ref[...]                                           # (O, I)
    k = k_ref[...]                                           # (O, I)

    # postacts (identity symbolic funs): post[b,j,i] = x[b,i]*W[j,i] + K[j,i]
    post = x[:, None, :] * w[None, :, :] + k[None, :, :]     # (TB, O, I)
    if flatten_post:
        tb = post.shape[0]
        post_ref[...] = post.reshape(tb, -1).astype(post_ref.dtype)
    else:
        post_ref[...] = post.astype(post_ref.dtype)

    # y[b,j] = sum_i post[b,j,i] = (x @ W.T)[b,j] + sum_i K[j,i]  -> MXU
    y = jnp.dot(x, wt_ref[...], preferred_element_type=jnp.float32)
    y = y + kbias_ref[...]
    y_ref[...] = y.astype(y_ref.dtype)


def _pick_batch_tile(batch, out_dim, in_dim, itemsize=4,
                     vmem_budget_bytes=8 * 1024 * 1024):
    # Dominant per-batch-row VMEM cost (double-buffered by the pipeline):
    # post tile (O*I) + x tile (I) + y tile (O).  Budget kept well under the
    # v7x 32 MiB scoped / 64 MiB physical VMEM (params add only ~3*O*I words).
    per_row = 2 * itemsize * (out_dim * in_dim + in_dim + out_dim)
    tb = max(8, vmem_budget_bytes // max(per_row, 1))
    tb = min(tb, batch, 1024)
    if batch >= 8:
        tb = max(8, (tb // 8) * 8)      # keep sublane multiple for f32
    else:
        tb = batch
    return tb


def symbolic_kan_forward(x, affine, mask, *, batch_tile=None, force_pallas=False):
    """x: (B, in_dim); affine: (out_dim, in_dim, 4); mask: (out_dim, in_dim)."""
    B, I = x.shape
    O = mask.shape[0]

    # Tiny problems: fixed pallas_call / per-step overhead dwarfs the work;
    # let XLA fuse the elementwise reference instead.
    if not force_pallas and B * O * I < (1 << 16):
        return symbolic_kan_reference(x, affine, mask)

    a = affine[..., 0]
    b = affine[..., 1]
    c = affine[..., 2]
    d = affine[..., 3]
    w = (mask * c * a).astype(x.dtype)                 # (O, I)
    k = (mask * (c * b + d)).astype(x.dtype)           # (O, I)
    wt = w.T                                           # (I, O), tiny one-time op
    kbias = jnp.sum(k.astype(jnp.float32), axis=1)[None, :].astype(x.dtype)  # (1, O)

    if batch_tile is None:
        batch_tile = _pick_batch_tile(B, O, I, jnp.dtype(x.dtype).itemsize)
    tb = min(batch_tile, B)
    grid = (pl.cdiv(B, tb),)

    # Lane-dense output: if in_dim alone can't fill the 128-lane axis, store a
    # flat (TB, O*I) block and reshape back outside the kernel (free bitcast).
    flatten_post = I < 128
    if flatten_post:
        post_out_shape = jax.ShapeDtypeStruct((B, O * I), x.dtype)
        post_spec = pl.BlockSpec((tb, O * I), lambda bi: (bi, 0))
    else:
        post_out_shape = jax.ShapeDtypeStruct((B, O, I), x.dtype)
        post_spec = pl.BlockSpec((tb, O, I), lambda bi: (bi, 0, 0))

    kernel = functools.partial(_symbolic_kan_kernel, flatten_post=flatten_post)

    y, post = pl.pallas_call(
        kernel,
        out_shape=(jax.ShapeDtypeStruct((B, O), x.dtype), post_out_shape),
        grid=grid,
        in_specs=[
            pl.BlockSpec((tb, I), lambda bi: (bi, 0)),   # x (batch-tiled)
            pl.BlockSpec((O, I), lambda bi: (0, 0)),     # W   (grid-invariant)
            pl.BlockSpec((O, I), lambda bi: (0, 0)),     # K   (grid-invariant)
            pl.BlockSpec((I, O), lambda bi: (0, 0)),     # W.T (grid-invariant)
            pl.BlockSpec((1, O), lambda bi: (0, 0)),     # sum_i K
        ],
        out_specs=(
            pl.BlockSpec((tb, O), lambda bi: (bi, 0)),   # y
            post_spec,                                   # postacts
        ),
        compiler_params=pltpu.CompilerParams(
            dimension_semantics=("parallel",),
            vmem_limit_bytes=32 * 1024 * 1024,
        ),
    )(x, w, k, wt, kbias)

    if flatten_post:
        post = post.reshape(B, O, I)   # row-major contiguous -> free reshape
    return y, post


def symbolic_kan_reference(x, affine, mask):
    # Pure-JAX reference mirroring the PyTorch loops (identity funs).
    a = affine[..., 0]
    b = affine[..., 1]
    c = affine[..., 2]
    d = affine[..., 3]
    inner = a[None] * x[:, None, :] + b[None]
    post = mask[None] * (c[None] * inner + d[None])   # (B, O, I)
    y = jnp.sum(post, axis=2)                         # (B, O)
    return y, post


if __name__ == "__main__":
    # Small, TPU-friendly shapes consistent with the module's forward.
    batch, in_dim, out_dim = 256, 16, 8
    key = jax.random.PRNGKey(0)
    kx, ka, km = jax.random.split(key, 3)

    x = jax.random.normal(kx, (batch, in_dim), dtype=jnp.float32)
    # Module shapes: affine (O, I, 4), mask (O, I). Module __init__ zeros both;
    # use deterministic nonzero values so the full compute path is exercised.
    affine = jax.random.normal(ka, (out_dim, in_dim, 4), dtype=jnp.float32)
    mask = (jax.random.uniform(km, (out_dim, in_dim)) > 0.3).astype(jnp.float32)

    # batch_tile=64 -> grid of 4 steps, exercising the pipelined batch tiling.
    y, post = symbolic_kan_forward(x, affine, mask, batch_tile=64,
                                   force_pallas=True)
    jax.block_until_ready((y, post))

    y_ref, post_ref = symbolic_kan_reference(x, affine, mask)
    assert y.shape == (batch, out_dim)
    assert post.shape == (batch, out_dim, in_dim)
    # y uses an MXU matmul (different f32 accumulation order than the lane
    # reduce in the reference), so use a slightly looser tolerance.
    assert jnp.allclose(post, post_ref, atol=1e-4, rtol=1e-4)
    assert jnp.allclose(y, y_ref, atol=1e-4, rtol=1e-4)

    print("KERNEL_OK")
</pallas_src>

<mosaic_0001>
module attributes {stable_mosaic.version = 11 : i64} {
  func.func @_symbolic_kan_kernel(%arg0: i32, %arg1: memref<64x16xf32, #tpu.memory_space<vmem>>, %arg2: memref<8x16xf32, #tpu.memory_space<vmem>>, %arg3: memref<8x16xf32, #tpu.memory_space<vmem>>, %arg4: memref<16x8xf32, #tpu.memory_space<vmem>>, %arg5: memref<1x8xf32, #tpu.memory_space<vmem>>, %arg6: memref<64x8xf32, #tpu.memory_space<vmem>>, %arg7: memref<64x128xf32, #tpu.memory_space<vmem>>) attributes {dimension_semantics = [#tpu.dimension_semantics<parallel>], iteration_bounds = array<i64: 4>, scalar_prefetch = 0 : i64, scratch_operands = 0 : i64, tpu.core_type = #tpu.core_type<tc>, window_params = [{transform_indices = @transform_0, window_bounds = array<i64: 64, 16>}, {pipeline_mode = #tpu.pipeline_mode<synchronous>, transform_indices = @transform_1, window_bounds = array<i64: 8, 16>}, {pipeline_mode = #tpu.pipeline_mode<synchronous>, transform_indices = @transform_2, window_bounds = array<i64: 8, 16>}, {pipeline_mode = #tpu.pipeline_mode<synchronous>, transform_indices = @transform_3, window_bounds = array<i64: 16, 8>}, {pipeline_mode = #tpu.pipeline_mode<synchronous>, transform_indices = @transform_4, window_bounds = array<i64: 1, 8>}, {transform_indices = @transform_5, window_bounds = array<i64: 64, 8>}, {transform_indices = @transform_6, window_bounds = array<i64: 64, 128>}]} {
    %c0 = arith.constant 0 : index
    %c0_0 = arith.constant 0 : index
    %0 = vector.load %arg1[%c0, %c0_0] : memref<64x16xf32, #tpu.memory_space<vmem>>, vector<64x16xf32>
    %c0_1 = arith.constant 0 : index
    %c0_2 = arith.constant 0 : index
    %1 = vector.load %arg2[%c0_1, %c0_2] : memref<8x16xf32, #tpu.memory_space<vmem>>, vector<8x16xf32>
    %c0_3 = arith.constant 0 : index
    %c0_4 = arith.constant 0 : index
    %2 = vector.load %arg3[%c0_3, %c0_4] : memref<8x16xf32, #tpu.memory_space<vmem>>, vector<8x16xf32>
    %3 = vector.shape_cast %0 : vector<64x16xf32> to vector<64x1x16xf32>
    %4 = vector.shape_cast %1 : vector<8x16xf32> to vector<1x8x16xf32>
    %5 = vector.broadcast %3 : vector<64x1x16xf32> to vector<64x8x16xf32>
    %6 = vector.broadcast %4 : vector<1x8x16xf32> to vector<64x8x16xf32>
    %7 = arith.mulf %5, %6 : vector<64x8x16xf32>
    %8 = vector.shape_cast %2 : vector<8x16xf32> to vector<1x8x16xf32>
    %9 = vector.broadcast %8 : vector<1x8x16xf32> to vector<64x8x16xf32>
    %10 = arith.addf %7, %9 : vector<64x8x16xf32>
    %11 = vector.shape_cast %10 : vector<64x8x16xf32> to vector<64x128xf32>
    %c0_5 = arith.constant 0 : index
    %c0_6 = arith.constant 0 : index
    %12 = vector.load %arg7[%c0_5, %c0_6] : memref<64x128xf32, #tpu.memory_space<vmem>>, vector<64x128xf32>
    tpu.vector_store %arg7[%c0_5, %c0_6], %11 {strides = array<i32>} : memref<64x128xf32, #tpu.memory_space<vmem>>, vector<64x128xf32>,
    %c0_7 = arith.constant 0 : index
    %c0_8 = arith.constant 0 : index
    %13 = vector.load %arg4[%c0_7, %c0_8] : memref<16x8xf32, #tpu.memory_space<vmem>>, vector<16x8xf32>
    %cst = arith.constant dense<0.000000e+00> : vector<64x8xf32>
    %14 = tpu.matmul %0, %13, %cst {dimension_numbers = #tpu.dot_dimension_numbers<[1], [0], [0], [1], [0, 0, 1, 1], [], []>} : vector<64x16xf32>, vector<16x8xf32>, vector<64x8xf32> -> vector<64x8xf32>
    %c0_9 = arith.constant 0 : index
    %c0_10 = arith.constant 0 : index
    %15 = vector.load %arg5[%c0_9, %c0_10] : memref<1x8xf32, #tpu.memory_space<vmem>>, vector<1x8xf32>
    %16 = vector.broadcast %15 : vector<1x8xf32> to vector<64x8xf32>
    %17 = arith.addf %14, %16 : vector<64x8xf32>
    %c0_11 = arith.constant 0 : index
    %c0_12 = arith.constant 0 : index
    %18 = vector.load %arg6[%c0_11, %c0_12] : memref<64x8xf32, #tpu.memory_space<vmem>>, vector<64x8xf32>
    tpu.vector_store %arg6[%c0_11, %c0_12], %17 {strides = array<i32>} : memref<64x8xf32, #tpu.memory_space<vmem>>, vector<64x8xf32>,
    return
  }
  func.func @transform_0(%arg0: i32) -> (i32, i32) {
    %c0_i32 = arith.constant 0 : i32
    %c0_i32_0 = arith.constant 0 : i32
    return %arg0, %c0_i32 : i32, i32
  }
  func.func @transform_1(%arg0: i32) -> (i32, i32) {
    %c0_i32 = arith.constant 0 : i32
    %c0_i32_0 = arith.constant 0 : i32
    %c0_i32_1 = arith.constant 0 : i32
    return %c0_i32, %c0_i32_0 : i32, i32
  }
  func.func @transform_2(%arg0: i32) -> (i32, i32) {
    %c0_i32 = arith.constant 0 : i32
    %c0_i32_0 = arith.constant 0 : i32
    %c0_i32_1 = arith.constant 0 : i32
    return %c0_i32, %c0_i32_0 : i32, i32
  }
  func.func @transform_3(%arg0: i32) -> (i32, i32) {
    %c0_i32 = arith.constant 0 : i32
    %c0_i32_0 = arith.constant 0 : i32
    %c0_i32_1 = arith.constant 0 : i32
    return %c0_i32, %c0_i32_0 : i32, i32
  }
  func.func @transform_4(%arg0: i32) -> (i32, i32) {
    %c0_i32 = arith.constant 0 : i32
    %c0_i32_0 = arith.constant 0 : i32
    %c0_i32_1 = arith.constant 0 : i32
    return %c0_i32, %c0_i32_0 : i32, i32
  }
  func.func @transform_5(%arg0: i32) -> (i32, i32) {
    %c0_i32 = arith.constant 0 : i32
    %c0_i32_0 = arith.constant 0 : i32
    return %arg0, %c0_i32 : i32, i32
  }
  func.func @transform_6(%arg0: i32) -> (i32, i32) {
    %c0_i32 = arith.constant 0 : i32
    %c0_i32_0 = arith.constant 0 : i32
    return %arg0, %c0_i32 : i32, i32
  }
}

</mosaic_0001>

<llo_original>
// kernel: tpu_custom_call.1
$region0: #{tpu_custom_call.1}
  #allocation0 [shape = 'u32[]', space=smem, size = 0x4, offset = 0x4, fixed_abs, tag = 'smem constant byte address 0x4 - core index']
  #allocation1 [shape = 'u32[144,128]{1,0:T(1,128)}', space=vmem, size = 0x12000, scoped, tag = 'internal scratch']
  %s0 = inlined_call_operand.vmem [shape: f32[256,16], index: 0, kind: input, shape index: {}]
  %s1 = inlined_call_operand.vmem [shape: f32[8,16], index: 1, kind: input, shape index: {}]
  %s2 = inlined_call_operand.vmem [shape: f32[8,16], index: 2, kind: input, shape index: {}]
  %s3 = inlined_call_operand.vmem [shape: f32[16,8], index: 3, kind: input, shape index: {}]
  %s4 = inlined_call_operand.vmem [shape: f32[1,8], index: 4, kind: input, shape index: {}]
  %s5 = inlined_call_operand.vmem [shape: f32[256,8], index: 5, kind: output, shape index: {0}]
  %s6 = inlined_call_operand.hbm [shape: f32[256,128], index: 6, kind: output, shape index: {1}]
  %7 = xla_tuple %s5, %s6
  %s8 = sld [smem:[#allocation0]]
  $region61: #{tpu_custom_call.1} parent=0
    _
  %s10 = ssub.s32 1, %s8
  %s11 = scalar_select 0, %s10, %s8
  $region1: #{tpu_custom_call.1} parent=0
    #allocation2 [shape = 'u8[65536]{0}', space=vmem, size = 0x10000, scoped, tag = 'output window, operand 1']
    #allocation3 [shape = 's32[2]{0}', space=sflag, size = 0x8, scoped, tag = 'scoped memory for tpu_custom_call.1']
    %12 = vsyncpa [#allocation3], 0
    %s13 = scalar_lea.sflag [#allocation3], 1
    %14 = vsyncpa %s13, 0
    loop: start=0, step=1, limit=6
    $region2: #{tpu_custom_call.1} parent=1 // loop_pre_header
      _
    $region3: #{tpu_custom_call.1} parent=1 // loop_header
      %s16 = sphi 0, %s20
      %p17 = scmp.ge.s32.totalorder %s16, 6
      %s26 = sphi 0, %s28
      %s29 = sphi 0, %s26
      %s30 = sphi 0, %s29
      %s46 = sphi 0, %s30
      %s50 = sphi 0, %s50
      %s52 = sphi 0, %s50
      %s53 = sphi 0, %s52
      %s67 = sphi 0, %s53
      %s71 = sphi 0, %s71
      %s73 = sphi 0, %s71
      %s74 = sphi 0, %s73
      %s88 = sphi 0, %s74
      %s92 = sphi 0, %s92
      %s94 = sphi 0, %s92
      %s95 = sphi 0, %s94
      %s109 = sphi 0, %s95
      %s113 = sphi 0, %s113
      %s115 = sphi 0, %s113
      %s116 = sphi 0, %s115
      %s130 = sphi 0, %s116
      %s136 = sphi 0, %s138
      %s139 = sphi 0, %s136
      %s140 = sphi 0, %s139
      %s156 = sphi 0, %s140
      %s162 = sphi 0, %s164
      %s165 = sphi 0, %s162
      %s166 = sphi 0, %s165
      %s182 = sphi 0, %s166
    $region4: #{tpu_custom_call.1} parent=1 // loop_header_branch
      %19 = sbr.rel (%p17) target = $region8
    $region5: #{tpu_custom_call.1} parent=1 // loop_body
      %s21 = ssub.s32 %s16, 1
      %s22 = ssub.s32 %s16, 2
      %s23 = sadd.s32 %s16, 1
      %s24 = ssub.s32 %s16, %s23
      %p25 = scmp.eq.s32.totalorder %s24, 0
      %s27 = sadd.s32 %s26, 1
      %s28 = scalar_select %p25, %s26, %s27
      %p31 = pneg %p25
      %p32 = scmp.eq.s32.totalorder %s16, 3
      %p33 = por %p31, %p32
      %p34 = scmp.ne.s32.totalorder %s26, %s29
      %p35 = scmp.eq.s32.totalorder %s16, 0
      %p36 = por %p34, %p35
      %p37 = scmp.ne.s32.totalorder %s26, %s29
      %p38 = scmp.eq.s32.totalorder %s21, 3
      %p39 = por %p37, %p38
      %p40 = scmp.ne.s32.totalorder %s29, %s30
      %p41 = scmp.eq.s32.totalorder %s21, 0
      %p42 = por %p40, %p41
      %p43 = scmp.ne.s32.totalorder %s29, %s30
      %p44 = scmp.eq.s32.totalorder %s22, 3
      %p45 = por %p43, %p44
      %p47 = scmp.ne.s32.totalorder %s30, %s46
      %p48 = scmp.eq.s32.totalorder %s22, 0
      %p49 = por %p47, %p48
      %s51 = sadd.s32 %s50, 1
      %p54 = scmp.eq.s32.totalorder %s16, 3
      %p55 = scmp.ne.s32.totalorder %s50, %s52
      %p56 = scmp.eq.s32.totalorder %s16, 0
      %p57 = por %p55, %p56
      %p58 = scmp.ne.s32.totalorder %s50, %s52
      %p59 = scmp.eq.s32.totalorder %s21, 3
      %p60 = por %p58, %p59
      %p61 = scmp.ne.s32.totalorder %s52, %s53
      %p62 = scmp.eq.s32.totalorder %s21, 0
      %p63 = por %p61, %p62
      %p64 = scmp.ne.s32.totalorder %s52, %s53
      %p65 = scmp.eq.s32.totalorder %s22, 3
      %p66 = por %p64, %p65
      %p68 = scmp.ne.s32.totalorder %s53, %s67
      %p69 = scmp.eq.s32.totalorder %s22, 0
      %p70 = por %p68, %p69
      %s72 = sadd.s32 %s71, 1
      %p75 = scmp.eq.s32.totalorder %s16, 3
      %p76 = scmp.ne.s32.totalorder %s71, %s73
      %p77 = scmp.eq.s32.totalorder %s16, 0
      %p78 = por %p76, %p77
      %p79 = scmp.ne.s32.totalorder %s71, %s73
      %p80 = scmp.eq.s32.totalorder %s21, 3
      %p81 = por %p79, %p80
      %p82 = scmp.ne.s32.totalorder %s73, %s74
      %p83 = scmp.eq.s32.totalorder %s21, 0
      %p84 = por %p82, %p83
      %p85 = scmp.ne.s32.totalorder %s73, %s74
      %p86 = scmp.eq.s32.totalorder %s22, 3
      %p87 = por %p85, %p86
      %p89 = scmp.ne.s32.totalorder %s74, %s88
      %p90 = scmp.eq.s32.totalorder %s22, 0
      %p91 = por %p89, %p90
      %s93 = sadd.s32 %s92, 1
      %p96 = scmp.eq.s32.totalorder %s16, 3
      %p97 = scmp.ne.s32.totalorder %s92, %s94
      %p98 = scmp.eq.s32.totalorder %s16, 0
      %p99 = por %p97, %p98
      %p100 = scmp.ne.s32.totalorder %s92, %s94
      %p101 = scmp.eq.s32.totalorder %s21, 3
      %p102 = por %p100, %p101
      %p103 = scmp.ne.s32.totalorder %s94, %s95
      %p104 = scmp.eq.s32.totalorder %s21, 0
      %p105 = por %p103, %p104
      %p106 = scmp.ne.s32.totalorder %s94, %s95
      %p107 = scmp.eq.s32.totalorder %s22, 3
      %p108 = por %p106, %p107
      %p110 = scmp.ne.s32.totalorder %s95, %s109
      %p111 = scmp.eq.s32.totalorder %s22, 0
      %p112 = por %p110, %p111
      %s114 = sadd.s32 %s113, 1
      %p117 = scmp.eq.s32.totalorder %s16, 3
      %p118 = scmp.ne.s32.totalorder %s113, %s115
      %p119 = scmp.eq.s32.totalorder %s16, 0
      %p120 = por %p118, %p119
      %p121 = scmp.ne.s32.totalorder %s113, %s115
      %p122 = scmp.eq.s32.totalorder %s21, 3
      %p123 = por %p121, %p122
      %p124 = scmp.ne.s32.totalorder %s115, %s116
      %p125 = scmp.eq.s32.totalorder %s21, 0
      %p126 = por %p124, %p125
      %p127 = scmp.ne.s32.totalorder %s115, %s116
      %p128 = scmp.eq.s32.totalorder %s22, 3
      %p129 = por %p127, %p128
      %p131 = scmp.ne.s32.totalorder %s116, %s130
      %p132 = scmp.eq.s32.totalorder %s22, 0
      %p133 = por %p131, %p132
      %s134 = ssub.s32 %s16, %s23
      %p135 = scmp.eq.s32.totalorder %s134, 0
      %s137 = sadd.s32 %s136, 1
      %s138 = scalar_select %p135, %s136, %s137
      %p141 = pneg %p135
      %p142 = scmp.eq.s32.totalorder %s16, 3
      %p143 = por %p141, %p142
      %p144 = scmp.ne.s32.totalorder %s136, %s139
      %p145 = scmp.eq.s32.totalorder %s16, 0
      %p146 = por %p144, %p145
      %p147 = scmp.ne.s32.totalorder %s136, %s139
      %p148 = scmp.eq.s32.totalorder %s21, 3
      %p149 = por %p147, %p148
      %p150 = scmp.ne.s32.totalorder %s139, %s140
      %p151 = scmp.eq.s32.totalorder %s21, 0
      %p152 = por %p150, %p151
      %p153 = scmp.ne.s32.totalorder %s139, %s140
      %p154 = scmp.eq.s32.totalorder %s22, 3
      %p155 = por %p153, %p154
      %p157 = scmp.ne.s32.totalorder %s140, %s156
      %p158 = scmp.eq.s32.totalorder %s22, 0
      %p159 = por %p157, %p158
      %s160 = ssub.s32 %s16, %s23
      %p161 = scmp.eq.s32.totalorder %s160, 0
      %s163 = sadd.s32 %s162, 1
      %s164 = scalar_select %p161, %s162, %s163
      %p167 = pneg %p161
      %p168 = scmp.eq.s32.totalorder %s16, 3
      %p169 = por %p167, %p168
      %p170 = scmp.ne.s32.totalorder %s162, %s165
      %p171 = scmp.eq.s32.totalorder %s16, 0
      %p172 = por %p170, %p171
      %p173 = scmp.ne.s32.totalorder %s162, %s165
      %p174 = scmp.eq.s32.totalorder %s21, 3
      %p175 = por %p173, %p174
      %p176 = scmp.ne.s32.totalorder %s165, %s166
      %p177 = scmp.eq.s32.totalorder %s21, 0
      %p178 = por %p176, %p177
      %p179 = scmp.ne.s32.totalorder %s165, %s166
      %p180 = scmp.eq.s32.totalorder %s22, 3
      %p181 = por %p179, %p180
      %p183 = scmp.ne.s32.totalorder %s166, %s182
      %p184 = scmp.eq.s32.totalorder %s22, 0
      %p185 = por %p183, %p184
      %p186 = scmp.le.s32.totalorder 1, %s16
      %p187 = scmp.lt.s32.totalorder %s16, 5
      %p188 = pnand %p186, %p187
      %p189 = pneg %p188
      // Predicated region
      $region9: #{tpu_custom_call.1} parent=5 // pred_check
        _
      $region10: #{tpu_custom_call.1} parent=5 // pred_check_branch
        %191 = sbr.rel (%p188) target = $region12
      $region11: #{tpu_custom_call.1} parent=5 // pred_region
        %s192 = ssub.s32 %s16, 1
        // Predicated region
        $region13: #{tpu_custom_call.1} parent=11 // pred_check
          %p193 = pneg %p63
        $region14: #{tpu_custom_call.1} parent=11 // pred_check_branch
          %195 = sbr.rel (%p193) target = $region16
        $region15: #{tpu_custom_call.1} parent=11 // pred_region
          _
        $region16: #{tpu_custom_call.1} parent=11 // pred_fallthru
          _
        // Predicated region
        $region17: #{tpu_custom_call.1} parent=11 // pred_check
          %p196 = pneg %p84
        $region18: #{tpu_custom_call.1} parent=11 // pred_check_branch
          %198 = sbr.rel (%p196) target = $region20
        $region19: #{tpu_custom_call.1} parent=11 // pred_region
          _
        $region20: #{tpu_custom_call.1} parent=11 // pred_fallthru
          _
        // Predicated region
        $region21: #{tpu_custom_call.1} parent=11 // pred_check
          %p199 = pneg %p105
        $region22: #{tpu_custom_call.1} parent=11 // pred_check_branch
          %201 = sbr.rel (%p199) target = $region24
        $region23: #{tpu_custom_call.1} parent=11 // pred_region
          _
        $region24: #{tpu_custom_call.1} parent=11 // pred_fallthru
          _
        // Predicated region
        $region25: #{tpu_custom_call.1} parent=11 // pred_check
          %p202 = pneg %p126
        $region26: #{tpu_custom_call.1} parent=11 // pred_check_branch
          %204 = sbr.rel (%p202) target = $region28
        $region27: #{tpu_custom_call.1} parent=11 // pred_region
          _
        $region28: #{tpu_custom_call.1} parent=11 // pred_fallthru
          _
      $region12: #{tpu_custom_call.1} parent=5 // pred_fallthru
        _
      %p205 = scmp.lt.s32.totalorder %s16, 4
      // Predicated region
      $region29: #{tpu_custom_call.1} parent=5 // pred_check
        %p206 = pneg %p205
      $region30: #{tpu_custom_call.1} parent=5 // pred_check_branch
        %208 = sbr.rel (%p206) target = $region32
      $region31: #{tpu_custom_call.1} parent=5 // pred_region
        // Predicated region
        $region33: #{tpu_custom_call.1} parent=31 // pred_check
          %p209 = pneg %p36
        $region34: #{tpu_custom_call.1} parent=31 // pred_check_branch
          %211 = sbr.rel (%p209) target = $region36
        $region35: #{tpu_custom_call.1} parent=31 // pred_region
          %s212 = smul.u32 8, %s16
          %p213 = scmp.lt.s32.totalorder %s212, 31
          %s214 = scalar_select %p213, %s212, 31
          %s215 = smul.addr %s214, 8
          %s216 = scalar_lea.vmem %s0, %s215
          %s217 = smul.u32 8, %s16
        $region36: #{tpu_custom_call.1} parent=31 // pred_fallthru
          _
      $region32: #{tpu_custom_call.1} parent=5 // pred_fallthru
        _
      %p218 = scmp.le.s32.totalorder 1, %s16
      %p219 = scmp.lt.s32.totalorder %s16, 5
      %p220 = pnand %p218, %p219
      %p221 = pneg %p220
      // Predicated region
      $region37: #{tpu_custom_call.1} parent=5 // pred_check
        _
      $region38: #{tpu_custom_call.1} parent=5 // pred_check_branch
        %223 = sbr.rel (%p220) target = $region40
      $region39: #{tpu_custom_call.1} parent=5 // pred_region
        %s224 = ssub.s32 %s16, 1
        %s225 = smul.u32 8, %s21
        %p226 = scmp.lt.s32.totalorder %s225, 31
        %s227 = scalar_select %p226, %s225, 31
        %s228 = smul.addr %s227, 8
        %s229 = scalar_lea.vmem %s0, %s228
        %p230 = pneg %p42
        %p231 = pneg %p39
        %p232 = pneg %p63
        %p233 = pneg %p60
        %p234 = pneg %p84
        %p235 = pneg %p81
        %p236 = pneg %p105
        %p237 = pneg %p102
        %p238 = pneg %p126
        %p239 = pneg %p123
        %p240 = pneg %p152
        %p241 = pneg %p149
        %s242 = smul.u32 8, %s21
        %p243 = scmp.lt.s32.totalorder %s242, 31
        %s244 = scalar_select %p243, %s242, 31
        %s245 = smul.addr %s244, 8
        %s246 = scalar_lea.vmem %s5, %s245
        %p247 = pneg %p178
        %p248 = pneg %p175
        %s249 = sand.u32 %s165, 1
        %s250 = scalar_lea.sflag [#allocation3], %s249
        %s251 = sand.u32 %s165, 1
        %s252 = smul.addr %s251, 64
        %s253 = scalar_lea.vmem [#allocation2], %s252
        %s254 = smul.u32 8, %s21
        %p255 = scmp.lt.s32.totalorder %s254, 31
        %s256 = scalar_select %p255, %s254, 31
        %s257 = smul.addr %s256, 8
        %s258 = scalar_lea.vmem %s0, %s257
        %s259 = smul.u32 8, %s21
        %s260 = smul.u32 8, %s21
        %p261 = scmp.lt.s32.totalorder %s260, 31
        %s262 = scalar_select %p261, %s260, 31
        %s263 = smul.addr %s262, 8
        %s264 = scalar_lea.vmem %s5, %s263
        %s265 = smul.u32 8, %s21
        %s266 = smul.u32 8, %s21
        %v267 = vld [vmem:[%s258] sm:$0xff]
        %v268 = vld [vmem:[%s258 + $0x8] sm:$0xff]
        %v269 = vld [vmem:[%s258 + $0x10] sm:$0xff]
        %v270 = vld [vmem:[%s258 + $0x18] sm:$0xff]
        %v271 = vld [vmem:[%s258 + $0x20] sm:$0xff]
        %v272 = vld [vmem:[%s258 + $0x28] sm:$0xff]
        %v273 = vld [vmem:[%s258 + $0x30] sm:$0xff]
        %v274 = vld [vmem:[%s258 + $0x38] sm:$0xff]
        %v275 = vld [vmem:[%s1] sm:$0xff]
        %v276 = vld [vmem:[%s2] sm:$0xff]
        %v285 = vcombine.high %v267, %v267
        %v287 = vunpack.c.l.s4 1966171168
        %v288 = vunpack.c.0.s8 %v287
        %v289 = vlaneseq
        %v290 = vshrl.u32 %v289, 7
        %v291 = vsub.s32 %v288, %v290
        %v292 = vrot.slane %v267, %v291
        %v294 = vunpack.c.l.s4 1966171168
        %v295 = vunpack.c.0.s8 %v294
        %v296 = vlaneseq
        %v297 = vshrl.u32 %v296, 7
        %v298 = vsub.s32 %v295, %v297
        %v299 = vrot.slane %v285, %v298
        %v300 = vcombine.high %v292, %v292
        %v301 = vcombine.high %v299, %v299
        %v303 = vunpack.c.l.s4 1966171168
        %v304 = vunpack.c.0.s8 %v303
        %v305 = vlaneseq
        %v306 = vshrl.u32 %v305, 7
        %v307 = vsub.s32 %v304, %v306
        %v308 = vrot.slane %v292, %v307
        %v310 = vunpack.c.l.s4 1966171168
        %v311 = vunpack.c.0.s8 %v310
        %v312 = vlaneseq
        %v313 = vshrl.u32 %v312, 7
        %v314 = vsub.s32 %v311, %v313
        %v315 = vrot.slane %v299, %v314
        %v317 = vunpack.c.l.s4 1966171168
        %v318 = vunpack.c.0.s8 %v317
        %v319 = vlaneseq
        %v320 = vshrl.u32 %v319, 7
        %v321 = vsub.s32 %v318, %v320
        %v322 = vrot.slane %v300, %v321
        %v324 = vunpack.c.l.s4 1966171168
        %v325 = vunpack.c.0.s8 %v324
        %v326 = vlaneseq
        %v327 = vshrl.u32 %v326, 7
        %v328 = vsub.s32 %v325, %v327
        %v329 = vrot.slane %v301, %v328
        %v330 = vcombine.high %v308, %v308
        %v331 = vcombine.high %v315, %v315
        %v332 = vcombine.high %v322, %v322
        %v333 = vcombine.high %v329, %v329
        %v334 = vcombine.high %v268, %v268
        %v336 = vunpack.c.l.s4 1966171168
        %v337 = vunpack.c.0.s8 %v336
        %v338 = vlaneseq
        %v339 = vshrl.u32 %v338, 7
        %v340 = vsub.s32 %v337, %v339
        %v341 = vrot.slane %v268, %v340
        %v343 = vunpack.c.l.s4 1966171168
        %v344 = vunpack.c.0.s8 %v343
        %v345 = vlaneseq
        %v346 = vshrl.u32 %v345, 7
        %v347 = vsub.s32 %v344, %v346
        %v348 = vrot.slane %v334, %v347
        %v349 = vcombine.high %v341, %v341
        %v350 = vcombine.high %v348, %v348
        %v352 = vunpack.c.l.s4 1966171168
        %v353 = vunpack.c.0.s8 %v352
        %v354 = vlaneseq
        %v355 = vshrl.u32 %v354, 7
        %v356 = vsub.s32 %v353, %v355
        %v357 = vrot.slane %v341, %v356
        %v359 = vunpack.c.l.s4 1966171168
        %v360 = vunpack.c.0.s8 %v359
        %v361 = vlaneseq
        %v362 = vshrl.u32 %v361, 7
        %v363 = vsub.s32 %v360, %v362
        %v364 = vrot.slane %v348, %v363
        %v366 = vunpack.c.l.s4 1966171168
        %v367 = vunpack.c.0.s8 %v366
        %v368 = vlaneseq
        %v369 = vshrl.u32 %v368, 7
        %v370 = vsub.s32 %v367, %v369
        %v371 = vrot.slane %v349, %v370
        %v373 = vunpack.c.l.s4 1966171168
        %v374 = vunpack.c.0.s8 %v373
        %v375 = vlaneseq
        %v376 = vshrl.u32 %v375, 7
        %v377 = vsub.s32 %v374, %v376
        %v378 = vrot.slane %v350, %v377
        %v379 = vcombine.high %v357, %v357
        %v380 = vcombine.high %v364, %v364
        %v381 = vcombine.high %v371, %v371
        %v382 = vcombine.high %v378, %v378
        %v383 = vcombine.high %v269, %v269
        %v385 = vunpack.c.l.s4 1966171168
        %v386 = vunpack.c.0.s8 %v385
        %v387 = vlaneseq
        %v388 = vshrl.u32 %v387, 7
        %v389 = vsub.s32 %v386, %v388
        %v390 = vrot.slane %v269, %v389
        %v392 = vunpack.c.l.s4 1966171168
        %v393 = vunpack.c.0.s8 %v392
        %v394 = vlaneseq
        %v395 = vshrl.u32 %v394, 7
        %v396 = vsub.s32 %v393, %v395
        %v397 = vrot.slane %v383, %v396
        %v398 = vcombine.high %v390, %v390
        %v399 = vcombine.high %v397, %v397
        %v401 = vunpack.c.l.s4 1966171168
        %v402 = vunpack.c.0.s8 %v401
        %v403 = vlaneseq
        %v404 = vshrl.u32 %v403, 7
        %v405 = vsub.s32 %v402, %v404
        %v406 = vrot.slane %v390, %v405
        %v408 = vunpack.c.l.s4 1966171168
        %v409 = vunpack.c.0.s8 %v408
        %v410 = vlaneseq
        %v411 = vshrl.u32 %v410, 7
        %v412 = vsub.s32 %v409, %v411
        %v413 = vrot.slane %v397, %v412
        %v415 = vunpack.c.l.s4 1966171168
        %v416 = vunpack.c.0.s8 %v415
        %v417 = vlaneseq
        %v418 = vshrl.u32 %v417, 7
        %v419 = vsub.s32 %v416, %v418
        %v420 = vrot.slane %v398, %v419
        %v422 = vunpack.c.l.s4 1966171168
        %v423 = vunpack.c.0.s8 %v422
        %v424 = vlaneseq
        %v425 = vshrl.u32 %v424, 7
        %v426 = vsub.s32 %v423, %v425
        %v427 = vrot.slane %v399, %v426
        %v428 = vcombine.high %v406, %v406
        %v429 = vcombine.high %v413, %v413
        %v430 = vcombine.high %v420, %v420
        %v431 = vcombine.high %v427, %v427
        %v432 = vcombine.high %v270, %v270
        %v434 = vunpack.c.l.s4 1966171168
        %v435 = vunpack.c.0.s8 %v434
        %v436 = vlaneseq
        %v437 = vshrl.u32 %v436, 7
        %v438 = vsub.s32 %v435, %v437
        %v439 = vrot.slane %v270, %v438
        %v441 = vunpack.c.l.s4 1966171168
        %v442 = vunpack.c.0.s8 %v441
        %v443 = vlaneseq
        %v444 = vshrl.u32 %v443, 7
        %v445 = vsub.s32 %v442, %v444
        %v446 = vrot.slane %v432, %v445
        %v447 = vcombine.high %v439, %v439
        %v448 = vcombine.high %v446, %v446
        %v450 = vunpack.c.l.s4 1966171168
        %v451 = vunpack.c.0.s8 %v450
        %v452 = vlaneseq
        %v453 = vshrl.u32 %v452, 7
        %v454 = vsub.s32 %v451, %v453
        %v455 = vrot.slane %v439, %v454
        %v457 = vunpack.c.l.s4 1966171168
        %v458 = vunpack.c.0.s8 %v457
        %v459 = vlaneseq
        %v460 = vshrl.u32 %v459, 7
        %v461 = vsub.s32 %v458, %v460
        %v462 = vrot.slane %v446, %v461
        %v464 = vunpack.c.l.s4 1966171168
        %v465 = vunpack.c.0.s8 %v464
        %v466 = vlaneseq
        %v467 = vshrl.u32 %v466, 7
        %v468 = vsub.s32 %v465, %v467
        %v469 = vrot.slane %v447, %v468
        %v471 = vunpack.c.l.s4 1966171168
        %v472 = vunpack.c.0.s8 %v471
        %v473 = vlaneseq
        %v474 = vshrl.u32 %v473, 7
        %v475 = vsub.s32 %v472, %v474
        %v476 = vrot.slane %v448, %v475
        %v477 = vcombine.high %v455, %v455
        %v478 = vcombine.high %v462, %v462
        %v479 = vcombine.high %v469, %v469
        %v480 = vcombine.high %v476, %v476
        %v481 = vcombine.high %v271, %v271
        %v483 = vunpack.c.l.s4 1966171168
        %v484 = vunpack.c.0.s8 %v483
        %v485 = vlaneseq
        %v486 = vshrl.u32 %v485, 7
        %v487 = vsub.s32 %v484, %v486
        %v488 = vrot.slane %v271, %v487
        %v490 = vunpack.c.l.s4 1966171168
        %v491 = vunpack.c.0.s8 %v490
        %v492 = vlaneseq
        %v493 = vshrl.u32 %v492, 7
        %v494 = vsub.s32 %v491, %v493
        %v495 = vrot.slane %v481, %v494
        %v496 = vcombine.high %v488, %v488
        %v497 = vcombine.high %v495, %v495
        %v499 = vunpack.c.l.s4 1966171168
        %v500 = vunpack.c.0.s8 %v499
        %v501 = vlaneseq
        %v502 = vshrl.u32 %v501, 7
        %v503 = vsub.s32 %v500, %v502
        %v504 = vrot.slane %v488, %v503
        %v506 = vunpack.c.l.s4 1966171168
        %v507 = vunpack.c.0.s8 %v506
        %v508 = vlaneseq
        %v509 = vshrl.u32 %v508, 7
        %v510 = vsub.s32 %v507, %v509
        %v511 = vrot.slane %v495, %v510
        %v513 = vunpack.c.l.s4 1966171168
        %v514 = vunpack.c.0.s8 %v513
        %v515 = vlaneseq
        %v516 = vshrl.u32 %v515, 7
        %v517 = vsub.s32 %v514, %v516
        %v518 = vrot.slane %v496, %v517
        %v520 = vunpack.c.l.s4 1966171168
        %v521 = vunpack.c.0.s8 %v520
        %v522 = vlaneseq
        %v523 = vshrl.u32 %v522, 7
        %v524 = vsub.s32 %v521, %v523
        %v525 = vrot.slane %v497, %v524
        %v526 = vcombine.high %v504, %v504
        %v527 = vcombine.high %v511, %v511
        %v528 = vcombine.high %v518, %v518
        %v529 = vcombine.high %v525, %v525
        %v530 = vcombine.high %v272, %v272
        %v532 = vunpack.c.l.s4 1966171168
        %v533 = vunpack.c.0.s8 %v532
        %v534 = vlaneseq
        %v535 = vshrl.u32 %v534, 7
        %v536 = vsub.s32 %v533, %v535
        %v537 = vrot.slane %v272, %v536
        %v539 = vunpack.c.l.s4 1966171168
        %v540 = vunpack.c.0.s8 %v539
        %v541 = vlaneseq
        %v542 = vshrl.u32 %v541, 7
        %v543 = vsub.s32 %v540, %v542
        %v544 = vrot.slane %v530, %v543
        %v545 = vcombine.high %v537, %v537
        %v546 = vcombine.high %v544, %v544
        %v548 = vunpack.c.l.s4 1966171168
        %v549 = vunpack.c.0.s8 %v548
        %v550 = vlaneseq
        %v551 = vshrl.u32 %v550, 7
        %v552 = vsub.s32 %v549, %v551
        %v553 = vrot.slane %v537, %v552
        %v555 = vunpack.c.l.s4 1966171168
        %v556 = vunpack.c.0.s8 %v555
        %v557 = vlaneseq
        %v558 = vshrl.u32 %v557, 7
        %v559 = vsub.s32 %v556, %v558
        %v560 = vrot.slane %v544, %v559
        %v562 = vunpack.c.l.s4 1966171168
        %v563 = vunpack.c.0.s8 %v562
        %v564 = vlaneseq
        %v565 = vshrl.u32 %v564, 7
        %v566 = vsub.s32 %v563, %v565
        %v567 = vrot.slane %v545, %v566
        %v569 = vunpack.c.l.s4 1966171168
        %v570 = vunpack.c.0.s8 %v569
        %v571 = vlaneseq
        %v572 = vshrl.u32 %v571, 7
        %v573 = vsub.s32 %v570, %v572
        %v574 = vrot.slane %v546, %v573
        %v575 = vcombine.high %v553, %v553
        %v576 = vcombine.high %v560, %v560
        %v577 = vcombine.high %v567, %v567
        %v578 = vcombine.high %v574, %v574
        %v579 = vcombine.high %v273, %v273
        %v581 = vunpack.c.l.s4 1966171168
        %v582 = vunpack.c.0.s8 %v581
        %v583 = vlaneseq
        %v584 = vshrl.u32 %v583, 7
        %v585 = vsub.s32 %v582, %v584
        %v586 = vrot.slane %v273, %v585
        %v588 = vunpack.c.l.s4 1966171168
        %v589 = vunpack.c.0.s8 %v588
        %v590 = vlaneseq
        %v591 = vshrl.u32 %v590, 7
        %v592 = vsub.s32 %v589, %v591
        %v593 = vrot.slane %v579, %v592
        %v594 = vcombine.high %v586, %v586
        %v595 = vcombine.high %v593, %v593
        %v597 = vunpack.c.l.s4 1966171168
        %v598 = vunpack.c.0.s8 %v597
        %v599 = vlaneseq
        %v600 = vshrl.u32 %v599, 7
        %v601 = vsub.s32 %v598, %v600
        %v602 = vrot.slane %v586, %v601
        %v604 = vunpack.c.l.s4 1966171168
        %v605 = vunpack.c.0.s8 %v604
        %v606 = vlaneseq
        %v607 = vshrl.u32 %v606, 7
        %v608 = vsub.s32 %v605, %v607
        %v609 = vrot.slane %v593, %v608
        %v611 = vunpack.c.l.s4 1966171168
        %v612 = vunpack.c.0.s8 %v611
        %v613 = vlaneseq
        %v614 = vshrl.u32 %v613, 7
        %v615 = vsub.s32 %v612, %v614
        %v616 = vrot.slane %v594, %v615
        %v618 = vunpack.c.l.s4 1966171168
        %v619 = vunpack.c.0.s8 %v618
        %v620 = vlaneseq
        %v621 = vshrl.u32 %v620, 7
        %v622 = vsub.s32 %v619, %v621
        %v623 = vrot.slane %v595, %v622
        %v624 = vcombine.high %v602, %v602
        %v625 = vcombine.high %v609, %v609
        %v626 = vcombine.high %v616, %v616
        %v627 = vcombine.high %v623, %v623
        %v628 = vcombine.high %v274, %v274
        %v630 = vunpack.c.l.s4 1966171168
        %v631 = vunpack.c.0.s8 %v630
        %v632 = vlaneseq
        %v633 = vshrl.u32 %v632, 7
        %v634 = vsub.s32 %v631, %v633
        %v635 = vrot.slane %v274, %v634
        %v637 = vunpack.c.l.s4 1966171168
        %v638 = vunpack.c.0.s8 %v637
        %v639 = vlaneseq
        %v640 = vshrl.u32 %v639, 7
        %v641 = vsub.s32 %v638, %v640
        %v642 = vrot.slane %v628, %v641
        %v643 = vcombine.high %v635, %v635
        %v644 = vcombine.high %v642, %v642
        %v646 = vunpack.c.l.s4 1966171168
        %v647 = vunpack.c.0.s8 %v646
        %v648 = vlaneseq
        %v649 = vshrl.u32 %v648, 7
        %v650 = vsub.s32 %v647, %v649
        %v651 = vrot.slane %v635, %v650
        %v653 = vunpack.c.l.s4 1966171168
        %v654 = vunpack.c.0.s8 %v653
        %v655 = vlaneseq
        %v656 = vshrl.u32 %v655, 7
        %v657 = vsub.s32 %v654, %v656
        %v658 = vrot.slane %v642, %v657
        %v660 = vunpack.c.l.s4 1966171168
        %v661 = vunpack.c.0.s8 %v660
        %v662 = vlaneseq
        %v663 = vshrl.u32 %v662, 7
        %v664 = vsub.s32 %v661, %v663
        %v665 = vrot.slane %v643, %v664
        %v667 = vunpack.c.l.s4 1966171168
        %v668 = vunpack.c.0.s8 %v667
        %v669 = vlaneseq
        %v670 = vshrl.u32 %v669, 7
        %v671 = vsub.s32 %v668, %v670
        %v672 = vrot.slane %v644, %v671
        %v673 = vcombine.high %v651, %v651
        %v674 = vcombine.high %v658, %v658
        %v675 = vcombine.high %v665, %v665
        %v676 = vcombine.high %v672, %v672
        %v677 = vlaneseq
        %v678 = vshrl.u32 %v677, 7
        %v679 = vsub.s32 0, %v678
        %v680 = vrot.slane %v308, %v679
        %v681 = vlaneseq
        %v682 = vshrl.u32 %v681, 7
        %v683 = vsub.s32 0, %v682
        %v684 = vrot.slane %v322, %v683
        %v685 = vlaneseq
        %v686 = vshrl.u32 %v685, 7
        %v687 = vsub.s32 0, %v686
        %v688 = vrot.slane %v330, %v687
        %v689 = vlaneseq
        %v690 = vshrl.u32 %v689, 7
        %v691 = vsub.s32 0, %v690
        %v692 = vrot.slane %v332, %v691
        %v693 = vlaneseq
        %v694 = vshrl.u32 %v693, 7
        %v695 = vsub.s32 0, %v694
        %v696 = vrot.slane %v315, %v695
        %v697 = vlaneseq
        %v698 = vshrl.u32 %v697, 7
        %v699 = vsub.s32 0, %v698
        %v700 = vrot.slane %v329, %v699
        %v701 = vlaneseq
        %v702 = vshrl.u32 %v701, 7
        %v703 = vsub.s32 0, %v702
        %v704 = vrot.slane %v331, %v703
        %v705 = vlaneseq
        %v706 = vshrl.u32 %v705, 7
        %v707 = vsub.s32 0, %v706
        %v708 = vrot.slane %v333, %v707
        %v709 = vlaneseq
        %v710 = vshrl.u32 %v709, 7
        %v711 = vsub.s32 0, %v710
        %v712 = vrot.slane %v357, %v711
        %v713 = vlaneseq
        %v714 = vshrl.u32 %v713, 7
        %v715 = vsub.s32 0, %v714
        %v716 = vrot.slane %v371, %v715
        %v717 = vlaneseq
        %v718 = vshrl.u32 %v717, 7
        %v719 = vsub.s32 0, %v718
        %v720 = vrot.slane %v379, %v719
        %v721 = vlaneseq
        %v722 = vshrl.u32 %v721, 7
        %v723 = vsub.s32 0, %v722
        %v724 = vrot.slane %v381, %v723
        %v725 = vlaneseq
        %v726 = vshrl.u32 %v725, 7
        %v727 = vsub.s32 0, %v726
        %v728 = vrot.slane %v364, %v727
        %v729 = vlaneseq
        %v730 = vshrl.u32 %v729, 7
        %v731 = vsub.s32 0, %v730
        %v732 = vrot.slane %v378, %v731
        %v733 = vlaneseq
        %v734 = vshrl.u32 %v733, 7
        %v735 = vsub.s32 0, %v734
        %v736 = vrot.slane %v380, %v735
        %v737 = vlaneseq
        %v738 = vshrl.u32 %v737, 7
        %v739 = vsub.s32 0, %v738
        %v740 = vrot.slane %v382, %v739
        %v741 = vlaneseq
        %v742 = vshrl.u32 %v741, 7
        %v743 = vsub.s32 0, %v742
        %v744 = vrot.slane %v406, %v743
        %v745 = vlaneseq
        %v746 = vshrl.u32 %v745, 7
        %v747 = vsub.s32 0, %v746
        %v748 = vrot.slane %v420, %v747
        %v749 = vlaneseq
        %v750 = vshrl.u32 %v749, 7
        %v751 = vsub.s32 0, %v750
        %v752 = vrot.slane %v428, %v751
        %v753 = vlaneseq
        %v754 = vshrl.u32 %v753, 7
        %v755 = vsub.s32 0, %v754
        %v756 = vrot.slane %v430, %v755
        %v757 = vlaneseq
        %v758 = vshrl.u32 %v757, 7
        %v759 = vsub.s32 0, %v758
        %v760 = vrot.slane %v413, %v759
        %v761 = vlaneseq
        %v762 = vshrl.u32 %v761, 7
        %v763 = vsub.s32 0, %v762
        %v764 = vrot.slane %v427, %v763
        %v765 = vlaneseq
        %v766 = vshrl.u32 %v765, 7
        %v767 = vsub.s32 0, %v766
        %v768 = vrot.slane %v429, %v767
        %v769 = vlaneseq
        %v770 = vshrl.u32 %v769, 7
        %v771 = vsub.s32 0, %v770
        %v772 = vrot.slane %v431, %v771
        %v773 = vlaneseq
        %v774 = vshrl.u32 %v773, 7
        %v775 = vsub.s32 0, %v774
        %v776 = vrot.slane %v455, %v775
        %v777 = vlaneseq
        %v778 = vshrl.u32 %v777, 7
        %v779 = vsub.s32 0, %v778
        %v780 = vrot.slane %v469, %v779
        %v781 = vlaneseq
        %v782 = vshrl.u32 %v781, 7
        %v783 = vsub.s32 0, %v782
        %v784 = vrot.slane %v477, %v783
        %v785 = vlaneseq
        %v786 = vshrl.u32 %v785, 7
        %v787 = vsub.s32 0, %v786
        %v788 = vrot.slane %v479, %v787
        %v789 = vlaneseq
        %v790 = vshrl.u32 %v789, 7
        %v791 = vsub.s32 0, %v790
        %v792 = vrot.slane %v462, %v791
        %v793 = vlaneseq
        %v794 = vshrl.u32 %v793, 7
        %v795 = vsub.s32 0, %v794
        %v796 = vrot.slane %v476, %v795
        %v797 = vlaneseq
        %v798 = vshrl.u32 %v797, 7
        %v799 = vsub.s32 0, %v798
        %v800 = vrot.slane %v478, %v799
        %v801 = vlaneseq
        %v802 = vshrl.u32 %v801, 7
        %v803 = vsub.s32 0, %v802
        %v804 = vrot.slane %v480, %v803
        %v805 = vlaneseq
        %v806 = vshrl.u32 %v805, 7
        %v807 = vsub.s32 0, %v806
        %v808 = vrot.slane %v504, %v807
        %v809 = vlaneseq
        %v810 = vshrl.u32 %v809, 7
        %v811 = vsub.s32 0, %v810
        %v812 = vrot.slane %v518, %v811
        %v813 = vlaneseq
        %v814 = vshrl.u32 %v813, 7
        %v815 = vsub.s32 0, %v814
        %v816 = vrot.slane %v526, %v815
        %v817 = vlaneseq
        %v818 = vshrl.u32 %v817, 7
        %v819 = vsub.s32 0, %v818
        %v820 = vrot.slane %v528, %v819
        %v821 = vlaneseq
        %v822 = vshrl.u32 %v821, 7
        %v823 = vsub.s32 0, %v822
        %v824 = vrot.slane %v511, %v823
        %v825 = vlaneseq
        %v826 = vshrl.u32 %v825, 7
        %v827 = vsub.s32 0, %v826
        %v828 = vrot.slane %v525, %v827
        %v829 = vlaneseq
        %v830 = vshrl.u32 %v829, 7
        %v831 = vsub.s32 0, %v830
        %v832 = vrot.slane %v527, %v831
        %v833 = vlaneseq
        %v834 = vshrl.u32 %v833, 7
        %v835 = vsub.s32 0, %v834
        %v836 = vrot.slane %v529, %v835
        %v837 = vlaneseq
        %v838 = vshrl.u32 %v837, 7
        %v839 = vsub.s32 0, %v838
        %v840 = vrot.slane %v553, %v839
        %v841 = vlaneseq
        %v842 = vshrl.u32 %v841, 7
        %v843 = vsub.s32 0, %v842
        %v844 = vrot.slane %v567, %v843
        %v845 = vlaneseq
        %v846 = vshrl.u32 %v845, 7
        %v847 = vsub.s32 0, %v846
        %v848 = vrot.slane %v575, %v847
        %v849 = vlaneseq
        %v850 = vshrl.u32 %v849, 7
        %v851 = vsub.s32 0, %v850
        %v852 = vrot.slane %v577, %v851
        %v853 = vlaneseq
        %v854 = vshrl.u32 %v853, 7
        %v855 = vsub.s32 0, %v854
        %v856 = vrot.slane %v560, %v855
        %v857 = vlaneseq
        %v858 = vshrl.u32 %v857, 7
        %v859 = vsub.s32 0, %v858
        %v860 = vrot.slane %v574, %v859
        %v861 = vlaneseq
        %v862 = vshrl.u32 %v861, 7
        %v863 = vsub.s32 0, %v862
        %v864 = vrot.slane %v576, %v863
        %v865 = vlaneseq
        %v866 = vshrl.u32 %v865, 7
        %v867 = vsub.s32 0, %v866
        %v868 = vrot.slane %v578, %v867
        %v869 = vlaneseq
        %v870 = vshrl.u32 %v869, 7
        %v871 = vsub.s32 0, %v870
        %v872 = vrot.slane %v602, %v871
        %v873 = vlaneseq
        %v874 = vshrl.u32 %v873, 7
        %v875 = vsub.s32 0, %v874
        %v876 = vrot.slane %v616, %v875
        %v877 = vlaneseq
        %v878 = vshrl.u32 %v877, 7
        %v879 = vsub.s32 0, %v878
        %v880 = vrot.slane %v624, %v879
        %v881 = vlaneseq
        %v882 = vshrl.u32 %v881, 7
        %v883 = vsub.s32 0, %v882
        %v884 = vrot.slane %v626, %v883
        %v885 = vlaneseq
        %v886 = vshrl.u32 %v885, 7
        %v887 = vsub.s32 0, %v886
        %v888 = vrot.slane %v609, %v887
        %v889 = vlaneseq
        %v890 = vshrl.u32 %v889, 7
        %v891 = vsub.s32 0, %v890
        %v892 = vrot.slane %v623, %v891
        %v893 = vlaneseq
        %v894 = vshrl.u32 %v893, 7
        %v895 = vsub.s32 0, %v894
        %v896 = vrot.slane %v625, %v895
        %v897 = vlaneseq
        %v898 = vshrl.u32 %v897, 7
        %v899 = vsub.s32 0, %v898
        %v900 = vrot.slane %v627, %v899
        %v901 = vlaneseq
        %v902 = vshrl.u32 %v901, 7
        %v903 = vsub.s32 0, %v902
        %v904 = vrot.slane %v651, %v903
        %v905 = vlaneseq
        %v906 = vshrl.u32 %v905, 7
        %v907 = vsub.s32 0, %v906
        %v908 = vrot.slane %v665, %v907
        %v909 = vlaneseq
        %v910 = vshrl.u32 %v909, 7
        %v911 = vsub.s32 0, %v910
        %v912 = vrot.slane %v673, %v911
        %v913 = vlaneseq
        %v914 = vshrl.u32 %v913, 7
        %v915 = vsub.s32 0, %v914
        %v916 = vrot.slane %v675, %v915
        %v917 = vlaneseq
        %v918 = vshrl.u32 %v917, 7
        %v919 = vsub.s32 0, %v918
        %v920 = vrot.slane %v658, %v919
        %v921 = vlaneseq
        %v922 = vshrl.u32 %v921, 7
        %v923 = vsub.s32 0, %v922
        %v924 = vrot.slane %v672, %v923
        %v925 = vlaneseq
        %v926 = vshrl.u32 %v925, 7
        %v927 = vsub.s32 0, %v926
        %v928 = vrot.slane %v674, %v927
        %v929 = vlaneseq
        %v930 = vshrl.u32 %v929, 7
        %v931 = vsub.s32 0, %v930
        %v932 = vrot.slane %v676, %v931
        %v997 = vmul.f32 %v680, %v275
        %v998 = vmul.f32 %v684, %v275
        %v999 = vmul.f32 %v688, %v275
        %v1000 = vmul.f32 %v692, %v275
        %v1001 = vmul.f32 %v696, %v275
        %v1002 = vmul.f32 %v700, %v275
        %v1003 = vmul.f32 %v704, %v275
        %v1004 = vmul.f32 %v708, %v275
        %v1005 = vmul.f32 %v712, %v275
        %v1006 = vmul.f32 %v716, %v275
        %v1007 = vmul.f32 %v720, %v275
        %v1008 = vmul.f32 %v724, %v275
        %v1009 = vmul.f32 %v728, %v275
        %v1010 = vmul.f32 %v732, %v275
        %v1011 = vmul.f32 %v736, %v275
        %v1012 = vmul.f32 %v740, %v275
        %v1013 = vmul.f32 %v744, %v275
        %v1014 = vmul.f32 %v748, %v275
        %v1015 = vmul.f32 %v752, %v275
        %v1016 = vmul.f32 %v756, %v275
        %v1017 = vmul.f32 %v760, %v275
        %v1018 = vmul.f32 %v764, %v275
        %v1019 = vmul.f32 %v768, %v275
        %v1020 = vmul.f32 %v772, %v275
        %v1021 = vmul.f32 %v776, %v275
        %v1022 = vmul.f32 %v780, %v275
        %v1023 = vmul.f32 %v784, %v275
        %v1024 = vmul.f32 %v788, %v275
        %v1025 = vmul.f32 %v792, %v275
        %v1026 = vmul.f32 %v796, %v275
        %v1027 = vmul.f32 %v800, %v275
        %v1028 = vmul.f32 %v804, %v275
        %v1029 = vmul.f32 %v808, %v275
        %v1030 = vmul.f32 %v812, %v275
        %v1031 = vmul.f32 %v816, %v275
        %v1032 = vmul.f32 %v820, %v275
        %v1033 = vmul.f32 %v824, %v275
        %v1034 = vmul.f32 %v828, %v275
        %v1035 = vmul.f32 %v832, %v275
        %v1036 = vmul.f32 %v836, %v275
        %v1037 = vmul.f32 %v840, %v275
        %v1038 = vmul.f32 %v844, %v275
        %v1039 = vmul.f32 %v848, %v275
        %v1040 = vmul.f32 %v852, %v275
        %v1041 = vmul.f32 %v856, %v275
        %v1042 = vmul.f32 %v860, %v275
        %v1043 = vmul.f32 %v864, %v275
        %v1044 = vmul.f32 %v868, %v275
        %v1045 = vmul.f32 %v872, %v275
        %v1046 = vmul.f32 %v876, %v275
        %v1047 = vmul.f32 %v880, %v275
        %v1048 = vmul.f32 %v884, %v275
        %v1049 = vmul.f32 %v888, %v275
        %v1050 = vmul.f32 %v892, %v275
        %v1051 = vmul.f32 %v896, %v275
        %v1052 = vmul.f32 %v900, %v275
        %v1053 = vmul.f32 %v904, %v275
        %v1054 = vmul.f32 %v908, %v275
        %v1055 = vmul.f32 %v912, %v275
        %v1056 = vmul.f32 %v916, %v275
        %v1057 = vmul.f32 %v920, %v275
        %v1058 = vmul.f32 %v924, %v275
        %v1059 = vmul.f32 %v928, %v275
        %v1060 = vmul.f32 %v932, %v275
        %v1061 = vadd.f32 %v997, %v276
        %v1062 = vadd.f32 %v998, %v276
        %v1063 = vadd.f32 %v999, %v276
        %v1064 = vadd.f32 %v1000, %v276
        %v1065 = vadd.f32 %v1001, %v276
        %v1066 = vadd.f32 %v1002, %v276
        %v1067 = vadd.f32 %v1003, %v276
        %v1068 = vadd.f32 %v1004, %v276
        %v1069 = vadd.f32 %v1005, %v276
        %v1070 = vadd.f32 %v1006, %v276
        %v1071 = vadd.f32 %v1007, %v276
        %v1072 = vadd.f32 %v1008, %v276
        %v1073 = vadd.f32 %v1009, %v276
        %v1074 = vadd.f32 %v1010, %v276
        %v1075 = vadd.f32 %v1011, %v276
        %v1076 = vadd.f32 %v1012, %v276
        %v1077 = vadd.f32 %v1013, %v276
        %v1078 = vadd.f32 %v1014, %v276
        %v1079 = vadd.f32 %v1015, %v276
        %v1080 = vadd.f32 %v1016, %v276
        %v1081 = vadd.f32 %v1017, %v276
        %v1082 = vadd.f32 %v1018, %v276
        %v1083 = vadd.f32 %v1019, %v276
        %v1084 = vadd.f32 %v1020, %v276
        %v1085 = vadd.f32 %v1021, %v276
        %v1086 = vadd.f32 %v1022, %v276
        %v1087 = vadd.f32 %v1023, %v276
        %v1088 = vadd.f32 %v1024, %v276
        %v1089 = vadd.f32 %v1025, %v276
        %v1090 = vadd.f32 %v1026, %v276
        %v1091 = vadd.f32 %v1027, %v276
        %v1092 = vadd.f32 %v1028, %v276
        %v1093 = vadd.f32 %v1029, %v276
        %v1094 = vadd.f32 %v1030, %v276
        %v1095 = vadd.f32 %v1031, %v276
        %v1096 = vadd.f32 %v1032, %v276
        %v1097 = vadd.f32 %v1033, %v276
        %v1098 = vadd.f32 %v1034, %v276
        %v1099 = vadd.f32 %v1035, %v276
        %v1100 = vadd.f32 %v1036, %v276
        %v1101 = vadd.f32 %v1037, %v276
        %v1102 = vadd.f32 %v1038, %v276
        %v1103 = vadd.f32 %v1039, %v276
        %v1104 = vadd.f32 %v1040, %v276
        %v1105 = vadd.f32 %v1041, %v276
        %v1106 = vadd.f32 %v1042, %v276
        %v1107 = vadd.f32 %v1043, %v276
        %v1108 = vadd.f32 %v1044, %v276
        %v1109 = vadd.f32 %v1045, %v276
        %v1110 = vadd.f32 %v1046, %v276
        %v1111 = vadd.f32 %v1047, %v276
        %v1112 = vadd.f32 %v1048, %v276
        %v1113 = vadd.f32 %v1049, %v276
        %v1114 = vadd.f32 %v1050, %v276
        %v1115 = vadd.f32 %v1051, %v276
        %v1116 = vadd.f32 %v1052, %v276
        %v1117 = vadd.f32 %v1053, %v276
        %v1118 = vadd.f32 %v1054, %v276
        %v1119 = vadd.f32 %v1055, %v276
        %v1120 = vadd.f32 %v1056, %v276
        %v1121 = vadd.f32 %v1057, %v276
        %v1122 = vadd.f32 %v1058, %v276
        %v1123 = vadd.f32 %v1059, %v276
        %v1124 = vadd.f32 %v1060, %v276
        %v1125 = vcombine.low %v1061, %v1063
        %v1126 = vcombine.high %v1061, %v1063
        %v1128 = vunpack.c.l.s4 1983009808
        %v1129 = vunpack.c.0.s8 %v1128
        %v1130 = vlaneseq
        %v1131 = vshrl.u32 %v1130, 7
        %v1132 = vsub.s32 %v1129, %v1131
        %v1133 = vrot.slane %v1125, %v1132
        %v1135 = vunpack.c.l.s4 1983009808
        %v1136 = vunpack.c.0.s8 %v1135
        %v1137 = vlaneseq
        %v1138 = vshrl.u32 %v1137, 7
        %v1139 = vsub.s32 %v1136, %v1138
        %v1140 = vrot.slane %v1126, %v1139
        %v1141 = vcombine.low %v1062, %v1064
        %v1142 = vcombine.high %v1062, %v1064
        %v1144 = vunpack.c.l.s4 1983009808
        %v1145 = vunpack.c.0.s8 %v1144
        %v1146 = vlaneseq
        %v1147 = vshrl.u32 %v1146, 7
        %v1148 = vsub.s32 %v1145, %v1147
        %v1149 = vrot.slane %v1141, %v1148
        %v1151 = vunpack.c.l.s4 1983009808
        %v1152 = vunpack.c.0.s8 %v1151
        %v1153 = vlaneseq
        %v1154 = vshrl.u32 %v1153, 7
        %v1155 = vsub.s32 %v1152, %v1154
        %v1156 = vrot.slane %v1142, %v1155
        %v1157 = vcombine.low %v1065, %v1067
        %v1158 = vcombine.high %v1065, %v1067
        %v1160 = vunpack.c.l.s4 1983009808
        %v1161 = vunpack.c.0.s8 %v1160
        %v1162 = vlaneseq
        %v1163 = vshrl.u32 %v1162, 7
        %v1164 = vsub.s32 %v1161, %v1163
        %v1165 = vrot.slane %v1157, %v1164
        %v1167 = vunpack.c.l.s4 1983009808
        %v1168 = vunpack.c.0.s8 %v1167
        %v1169 = vlaneseq
        %v1170 = vshrl.u32 %v1169, 7
        %v1171 = vsub.s32 %v1168, %v1170
        %v1172 = vrot.slane %v1158, %v1171
        %v1173 = vcombine.low %v1066, %v1068
        %v1174 = vcombine.high %v1066, %v1068
        %v1176 = vunpack.c.l.s4 1983009808
        %v1177 = vunpack.c.0.s8 %v1176
        %v1178 = vlaneseq
        %v1179 = vshrl.u32 %v1178, 7
        %v1180 = vsub.s32 %v1177, %v1179
        %v1181 = vrot.slane %v1173, %v1180
        %v1183 = vunpack.c.l.s4 1983009808
        %v1184 = vunpack.c.0.s8 %v1183
        %v1185 = vlaneseq
        %v1186 = vshrl.u32 %v1185, 7
        %v1187 = vsub.s32 %v1184, %v1186
        %v1188 = vrot.slane %v1174, %v1187
        %v1189 = vcombine.low %v1133, %v1149
        %v1190 = vcombine.high %v1133, %v1149
        %v1192 = vunpack.c.l.s4 1934713408
        %v1193 = vunpack.c.0.s8 %v1192
        %v1194 = vlaneseq
        %v1195 = vshrl.u32 %v1194, 7
        %v1196 = vsub.s32 %v1193, %v1195
        %v1197 = vrot.slane %v1189, %v1196
        %v1199 = vunpack.c.l.s4 1934713408
        %v1200 = vunpack.c.0.s8 %v1199
        %v1201 = vlaneseq
        %v1202 = vshrl.u32 %v1201, 7
        %v1203 = vsub.s32 %v1200, %v1202
        %v1204 = vrot.slane %v1190, %v1203
        %v1205 = vcombine.low %v1140, %v1156
        %v1206 = vcombine.high %v1140, %v1156
        %v1208 = vunpack.c.l.s4 1934713408
        %v1209 = vunpack.c.0.s8 %v1208
        %v1210 = vlaneseq
        %v1211 = vshrl.u32 %v1210, 7
        %v1212 = vsub.s32 %v1209, %v1211
        %v1213 = vrot.slane %v1205, %v1212
        %v1215 = vunpack.c.l.s4 1934713408
        %v1216 = vunpack.c.0.s8 %v1215
        %v1217 = vlaneseq
        %v1218 = vshrl.u32 %v1217, 7
        %v1219 = vsub.s32 %v1216, %v1218
        %v1220 = vrot.slane %v1206, %v1219
        %v1221 = vcombine.low %v1165, %v1181
        %v1222 = vcombine.high %v1165, %v1181
        %v1224 = vunpack.c.l.s4 1934713408
        %v1225 = vunpack.c.0.s8 %v1224
        %v1226 = vlaneseq
        %v1227 = vshrl.u32 %v1226, 7
        %v1228 = vsub.s32 %v1225, %v1227
        %v1229 = vrot.slane %v1221, %v1228
        %v1231 = vunpack.c.l.s4 1934713408
        %v1232 = vunpack.c.0.s8 %v1231
        %v1233 = vlaneseq
        %v1234 = vshrl.u32 %v1233, 7
        %v1235 = vsub.s32 %v1232, %v1234
        %v1236 = vrot.slane %v1222, %v1235
        %v1237 = vcombine.low %v1172, %v1188
        %v1238 = vcombine.high %v1172, %v1188
        %v1240 = vunpack.c.l.s4 1934713408
        %v1241 = vunpack.c.0.s8 %v1240
        %v1242 = vlaneseq
        %v1243 = vshrl.u32 %v1242, 7
        %v1244 = vsub.s32 %v1241, %v1243
        %v1245 = vrot.slane %v1237, %v1244
        %v1247 = vunpack.c.l.s4 1934713408
        %v1248 = vunpack.c.0.s8 %v1247
        %v1249 = vlaneseq
        %v1250 = vshrl.u32 %v1249, 7
        %v1251 = vsub.s32 %v1248, %v1250
        %v1252 = vrot.slane %v1238, %v1251
        %v1253 = vcombine.low %v1197, %v1229
        %v1254 = vcombine.high %v1197, %v1229
        %v1255 = vcombine.low %v1204, %v1236
        %v1256 = vcombine.high %v1204, %v1236
        %v1257 = vcombine.low %v1213, %v1245
        %v1258 = vcombine.high %v1213, %v1245
        %v1259 = vcombine.low %v1220, %v1252
        %v1260 = vcombine.high %v1220, %v1252
        %v1261 = vcombine.low %v1069, %v1071
        %v1262 = vcombine.high %v1069, %v1071
        %v1264 = vunpack.c.l.s4 1983009808
        %v1265 = vunpack.c.0.s8 %v1264
        %v1266 = vlaneseq
        %v1267 = vshrl.u32 %v1266, 7
        %v1268 = vsub.s32 %v1265, %v1267
        %v1269 = vrot.slane %v1261, %v1268
        %v1271 = vunpack.c.l.s4 1983009808
        %v1272 = vunpack.c.0.s8 %v1271
        %v1273 = vlaneseq
        %v1274 = vshrl.u32 %v1273, 7
        %v1275 = vsub.s32 %v1272, %v1274
        %v1276 = vrot.slane %v1262, %v1275
        %v1277 = vcombine.low %v1070, %v1072
        %v1278 = vcombine.high %v1070, %v1072
        %v1280 = vunpack.c.l.s4 1983009808
        %v1281 = vunpack.c.0.s8 %v1280
        %v1282 = vlaneseq
        %v1283 = vshrl.u32 %v1282, 7
        %v1284 = vsub.s32 %v1281, %v1283
        %v1285 = vrot.slane %v1277, %v1284
        %v1287 = vunpack.c.l.s4 1983009808
        %v1288 = vunpack.c.0.s8 %v1287
        %v1289 = vlaneseq
        %v1290 = vshrl.u32 %v1289, 7
        %v1291 = vsub.s32 %v1288, %v1290
        %v1292 = vrot.slane %v1278, %v1291
        %v1293 = vcombine.low %v1073, %v1075
        %v1294 = vcombine.high %v1073, %v1075
        %v1296 = vunpack.c.l.s4 1983009808
        %v1297 = vunpack.c.0.s8 %v1296
        %v1298 = vlaneseq
        %v1299 = vshrl.u32 %v1298, 7
        %v1300 = vsub.s32 %v1297, %v1299
        %v1301 = vrot.slane %v1293, %v1300
        %v1303 = vunpack.c.l.s4 1983009808
        %v1304 = vunpack.c.0.s8 %v1303
        %v1305 = vlaneseq
        %v1306 = vshrl.u32 %v1305, 7
        %v1307 = vsub.s32 %v1304, %v1306
        %v1308 = vrot.slane %v1294, %v1307
        %v1309 = vcombine.low %v1074, %v1076
        %v1310 = vcombine.high %v1074, %v1076
        %v1312 = vunpack.c.l.s4 1983009808
        %v1313 = vunpack.c.0.s8 %v1312
        %v1314 = vlaneseq
        %v1315 = vshrl.u32 %v1314, 7
        %v1316 = vsub.s32 %v1313, %v1315
        %v1317 = vrot.slane %v1309, %v1316
        %v1319 = vunpack.c.l.s4 1983009808
        %v1320 = vunpack.c.0.s8 %v1319
        %v1321 = vlaneseq
        %v1322 = vshrl.u32 %v1321, 7
        %v1323 = vsub.s32 %v1320, %v1322
        %v1324 = vrot.slane %v1310, %v1323
        %v1325 = vcombine.low %v1269, %v1285
        %v1326 = vcombine.high %v1269, %v1285
        %v1328 = vunpack.c.l.s4 1934713408
        %v1329 = vunpack.c.0.s8 %v1328
        %v1330 = vlaneseq
        %v1331 = vshrl.u32 %v1330, 7
        %v1332 = vsub.s32 %v1329, %v1331
        %v1333 = vrot.slane %v1325, %v1332
        %v1335 = vunpack.c.l.s4 1934713408
        %v1336 = vunpack.c.0.s8 %v1335
        %v1337 = vlaneseq
        %v1338 = vshrl.u32 %v1337, 7
        %v1339 = vsub.s32 %v1336, %v1338
        %v1340 = vrot.slane %v1326, %v1339
        %v1341 = vcombine.low %v1276, %v1292
        %v1342 = vcombine.high %v1276, %v1292
        %v1344 = vunpack.c.l.s4 1934713408
        %v1345 = vunpack.c.0.s8 %v1344
        %v1346 = vlaneseq
        %v1347 = vshrl.u32 %v1346, 7
        %v1348 = vsub.s32 %v1345, %v1347
        %v1349 = vrot.slane %v1341, %v1348
        %v1351 = vunpack.c.l.s4 1934713408
        %v1352 = vunpack.c.0.s8 %v1351
        %v1353 = vlaneseq
        %v1354 = vshrl.u32 %v1353, 7
        %v1355 = vsub.s32 %v1352, %v1354
        %v1356 = vrot.slane %v1342, %v1355
        %v1357 = vcombine.low %v1301, %v1317
        %v1358 = vcombine.high %v1301, %v1317
        %v1360 = vunpack.c.l.s4 1934713408
        %v1361 = vunpack.c.0.s8 %v1360
        %v1362 = vlaneseq
        %v1363 = vshrl.u32 %v1362, 7
        %v1364 = vsub.s32 %v1361, %v1363
        %v1365 = vrot.slane %v1357, %v1364
        %v1367 = vunpack.c.l.s4 1934713408
        %v1368 = vunpack.c.0.s8 %v1367
        %v1369 = vlaneseq
        %v1370 = vshrl.u32 %v1369, 7
        %v1371 = vsub.s32 %v1368, %v1370
        %v1372 = vrot.slane %v1358, %v1371
        %v1373 = vcombine.low %v1308, %v1324
        %v1374 = vcombine.high %v1308, %v1324
        %v1376 = vunpack.c.l.s4 1934713408
        %v1377 = vunpack.c.0.s8 %v1376
        %v1378 = vlaneseq
        %v1379 = vshrl.u32 %v1378, 7
        %v1380 = vsub.s32 %v1377, %v1379
        %v1381 = vrot.slane %v1373, %v1380
        %v1383 = vunpack.c.l.s4 1934713408
        %v1384 = vunpack.c.0.s8 %v1383
        %v1385 = vlaneseq
        %v1386 = vshrl.u32 %v1385, 7
        %v1387 = vsub.s32 %v1384, %v1386
        %v1388 = vrot.slane %v1374, %v1387
        %v1389 = vcombine.low %v1333, %v1365
        %v1390 = vcombine.high %v1333, %v1365
        %v1391 = vcombine.low %v1340, %v1372
        %v1392 = vcombine.high %v1340, %v1372
        %v1393 = vcombine.low %v1349, %v1381
        %v1394 = vcombine.high %v1349, %v1381
        %v1395 = vcombine.low %v1356, %v1388
        %v1396 = vcombine.high %v1356, %v1388
        %v1397 = vcombine.low %v1077, %v1079
        %v1398 = vcombine.high %v1077, %v1079
        %v1400 = vunpack.c.l.s4 1983009808
        %v1401 = vunpack.c.0.s8 %v1400
        %v1402 = vlaneseq
        %v1403 = vshrl.u32 %v1402, 7
        %v1404 = vsub.s32 %v1401, %v1403
        %v1405 = vrot.slane %v1397, %v1404
        %v1407 = vunpack.c.l.s4 1983009808
        %v1408 = vunpack.c.0.s8 %v1407
        %v1409 = vlaneseq
        %v1410 = vshrl.u32 %v1409, 7
        %v1411 = vsub.s32 %v1408, %v1410
        %v1412 = vrot.slane %v1398, %v1411
        %v1413 = vcombine.low %v1078, %v1080
        %v1414 = vcombine.high %v1078, %v1080
        %v1416 = vunpack.c.l.s4 1983009808
        %v1417 = vunpack.c.0.s8 %v1416
        %v1418 = vlaneseq
        %v1419 = vshrl.u32 %v1418, 7
        %v1420 = vsub.s32 %v1417, %v1419
        %v1421 = vrot.slane %v1413, %v1420
        %v1423 = vunpack.c.l.s4 1983009808
        %v1424 = vunpack.c.0.s8 %v1423
        %v1425 = vlaneseq
        %v1426 = vshrl.u32 %v1425, 7
        %v1427 = vsub.s32 %v1424, %v1426
        %v1428 = vrot.slane %v1414, %v1427
        %v1429 = vcombine.low %v1081, %v1083
        %v1430 = vcombine.high %v1081, %v1083
        %v1432 = vunpack.c.l.s4 1983009808
        %v1433 = vunpack.c.0.s8 %v1432
        %v1434 = vlaneseq
        %v1435 = vshrl.u32 %v1434, 7
        %v1436 = vsub.s32 %v1433, %v1435
        %v1437 = vrot.slane %v1429, %v1436
        %v1439 = vunpack.c.l.s4 1983009808
        %v1440 = vunpack.c.0.s8 %v1439
        %v1441 = vlaneseq
        %v1442 = vshrl.u32 %v1441, 7
        %v1443 = vsub.s32 %v1440, %v1442
        %v1444 = vrot.slane %v1430, %v1443
        %v1445 = vcombine.low %v1082, %v1084
        %v1446 = vcombine.high %v1082, %v1084
        %v1448 = vunpack.c.l.s4 1983009808
        %v1449 = vunpack.c.0.s8 %v1448
        %v1450 = vlaneseq
        %v1451 = vshrl.u32 %v1450, 7
        %v1452 = vsub.s32 %v1449, %v1451
        %v1453 = vrot.slane %v1445, %v1452
        %v1455 = vunpack.c.l.s4 1983009808
        %v1456 = vunpack.c.0.s8 %v1455
        %v1457 = vlaneseq
        %v1458 = vshrl.u32 %v1457, 7
        %v1459 = vsub.s32 %v1456, %v1458
        %v1460 = vrot.slane %v1446, %v1459
        %v1461 = vcombine.low %v1405, %v1421
        %v1462 = vcombine.high %v1405, %v1421
        %v1464 = vunpack.c.l.s4 1934713408
        %v1465 = vunpack.c.0.s8 %v1464
        %v1466 = vlaneseq
        %v1467 = vshrl.u32 %v1466, 7
        %v1468 = vsub.s32 %v1465, %v1467
        %v1469 = vrot.slane %v1461, %v1468
        %v1471 = vunpack.c.l.s4 1934713408
        %v1472 = vunpack.c.0.s8 %v1471
        %v1473 = vlaneseq
        %v1474 = vshrl.u32 %v1473, 7
        %v1475 = vsub.s32 %v1472, %v1474
        %v1476 = vrot.slane %v1462, %v1475
        %v1477 = vcombine.low %v1412, %v1428
        %v1478 = vcombine.high %v1412, %v1428
        %v1480 = vunpack.c.l.s4 1934713408
        %v1481 = vunpack.c.0.s8 %v1480
        %v1482 = vlaneseq
        %v1483 = vshrl.u32 %v1482, 7
        %v1484 = vsub.s32 %v1481, %v1483
        %v1485 = vrot.slane %v1477, %v1484
        %v1487 = vunpack.c.l.s4 1934713408
        %v1488 = vunpack.c.0.s8 %v1487
        %v1489 = vlaneseq
        %v1490 = vshrl.u32 %v1489, 7
        %v1491 = vsub.s32 %v1488, %v1490
        %v1492 = vrot.slane %v1478, %v1491
        %v1493 = vcombine.low %v1437, %v1453
        %v1494 = vcombine.high %v1437, %v1453
        %v1496 = vunpack.c.l.s4 1934713408
        %v1497 = vunpack.c.0.s8 %v1496
        %v1498 = vlaneseq
        %v1499 = vshrl.u32 %v1498, 7
        %v1500 = vsub.s32 %v1497, %v1499
        %v1501 = vrot.slane %v1493, %v1500
        %v1503 = vunpack.c.l.s4 1934713408
        %v1504 = vunpack.c.0.s8 %v1503
        %v1505 = vlaneseq
        %v1506 = vshrl.u32 %v1505, 7
        %v1507 = vsub.s32 %v1504, %v1506
        %v1508 = vrot.slane %v1494, %v1507
        %v1509 = vcombine.low %v1444, %v1460
        %v1510 = vcombine.high %v1444, %v1460
        %v1512 = vunpack.c.l.s4 1934713408
        %v1513 = vunpack.c.0.s8 %v1512
        %v1514 = vlaneseq
        %v1515 = vshrl.u32 %v1514, 7
        %v1516 = vsub.s32 %v1513, %v1515
        %v1517 = vrot.slane %v1509, %v1516
        %v1519 = vunpack.c.l.s4 1934713408
        %v1520 = vunpack.c.0.s8 %v1519
        %v1521 = vlaneseq
        %v1522 = vshrl.u32 %v1521, 7
        %v1523 = vsub.s32 %v1520, %v1522
        %v1524 = vrot.slane %v1510, %v1523
        %v1525 = vcombine.low %v1469, %v1501
        %v1526 = vcombine.high %v1469, %v1501
        %v1527 = vcombine.low %v1476, %v1508
        %v1528 = vcombine.high %v1476, %v1508
        %v1529 = vcombine.low %v1485, %v1517
        %v1530 = vcombine.high %v1485, %v1517
        %v1531 = vcombine.low %v1492, %v1524
        %v1532 = vcombine.high %v1492, %v1524
        %v1533 = vcombine.low %v1085, %v1087
        %v1534 = vcombine.high %v1085, %v1087
        %v1536 = vunpack.c.l.s4 1983009808
        %v1537 = vunpack.c.0.s8 %v1536
        %v1538 = vlaneseq
        %v1539 = vshrl.u32 %v1538, 7
        %v1540 = vsub.s32 %v1537, %v1539
        %v1541 = vrot.slane %v1533, %v1540
        %v1543 = vunpack.c.l.s4 1983009808
        %v1544 = vunpack.c.0.s8 %v1543
        %v1545 = vlaneseq
        %v1546 = vshrl.u32 %v1545, 7
        %v1547 = vsub.s32 %v1544, %v1546
        %v1548 = vrot.slane %v1534, %v1547
        %v1549 = vcombine.low %v1086, %v1088
        %v1550 = vcombine.high %v1086, %v1088
        %v1552 = vunpack.c.l.s4 1983009808
        %v1553 = vunpack.c.0.s8 %v1552
        %v1554 = vlaneseq
        %v1555 = vshrl.u32 %v1554, 7
        %v1556 = vsub.s32 %v1553, %v1555
        %v1557 = vrot.slane %v1549, %v1556
        %v1559 = vunpack.c.l.s4 1983009808
        %v1560 = vunpack.c.0.s8 %v1559
        %v1561 = vlaneseq
        %v1562 = vshrl.u32 %v1561, 7
        %v1563 = vsub.s32 %v1560, %v1562
        %v1564 = vrot.slane %v1550, %v1563
        %v1565 = vcombine.low %v1089, %v1091
        %v1566 = vcombine.high %v1089, %v1091
        %v1568 = vunpack.c.l.s4 1983009808
        %v1569 = vunpack.c.0.s8 %v1568
        %v1570 = vlaneseq
        %v1571 = vshrl.u32 %v1570, 7
        %v1572 = vsub.s32 %v1569, %v1571
        %v1573 = vrot.slane %v1565, %v1572
        %v1575 = vunpack.c.l.s4 1983009808
        %v1576 = vunpack.c.0.s8 %v1575
        %v1577 = vlaneseq
        %v1578 = vshrl.u32 %v1577, 7
        %v1579 = vsub.s32 %v1576, %v1578
        %v1580 = vrot.slane %v1566, %v1579
        %v1581 = vcombine.low %v1090, %v1092
        %v1582 = vcombine.high %v1090, %v1092
        %v1584 = vunpack.c.l.s4 1983009808
        %v1585 = vunpack.c.0.s8 %v1584
        %v1586 = vlaneseq
        %v1587 = vshrl.u32 %v1586, 7
        %v1588 = vsub.s32 %v1585, %v1587
        %v1589 = vrot.slane %v1581, %v1588
        %v1591 = vunpack.c.l.s4 1983009808
        %v1592 = vunpack.c.0.s8 %v1591
        %v1593 = vlaneseq
        %v1594 = vshrl.u32 %v1593, 7
        %v1595 = vsub.s32 %v1592, %v1594
        %v1596 = vrot.slane %v1582, %v1595
        %v1597 = vcombine.low %v1541, %v1557
        %v1598 = vcombine.high %v1541, %v1557
        %v1600 = vunpack.c.l.s4 1934713408
        %v1601 = vunpack.c.0.s8 %v1600
        %v1602 = vlaneseq
        %v1603 = vshrl.u32 %v1602, 7
        %v1604 = vsub.s32 %v1601, %v1603
        %v1605 = vrot.slane %v1597, %v1604
        %v1607 = vunpack.c.l.s4 1934713408
        %v1608 = vunpack.c.0.s8 %v1607
        %v1609 = vlaneseq
        %v1610 = vshrl.u32 %v1609, 7
        %v1611 = vsub.s32 %v1608, %v1610
        %v1612 = vrot.slane %v1598, %v1611
        %v1613 = vcombine.low %v1548, %v1564
        %v1614 = vcombine.high %v1548, %v1564
        %v1616 = vunpack.c.l.s4 1934713408
        %v1617 = vunpack.c.0.s8 %v1616
        %v1618 = vlaneseq
        %v1619 = vshrl.u32 %v1618, 7
        %v1620 = vsub.s32 %v1617, %v1619
        %v1621 = vrot.slane %v1613, %v1620
        %v1623 = vunpack.c.l.s4 1934713408
        %v1624 = vunpack.c.0.s8 %v1623
        %v1625 = vlaneseq
        %v1626 = vshrl.u32 %v1625, 7
        %v1627 = vsub.s32 %v1624, %v1626
        %v1628 = vrot.slane %v1614, %v1627
        %v1629 = vcombine.low %v1573, %v1589
        %v1630 = vcombine.high %v1573, %v1589
        %v1632 = vunpack.c.l.s4 1934713408
        %v1633 = vunpack.c.0.s8 %v1632
        %v1634 = vlaneseq
        %v1635 = vshrl.u32 %v1634, 7
        %v1636 = vsub.s32 %v1633, %v1635
        %v1637 = vrot.slane %v1629, %v1636
        %v1639 = vunpack.c.l.s4 1934713408
        %v1640 = vunpack.c.0.s8 %v1639
        %v1641 = vlaneseq
        %v1642 = vshrl.u32 %v1641, 7
        %v1643 = vsub.s32 %v1640, %v1642
        %v1644 = vrot.slane %v1630, %v1643
        %v1645 = vcombine.low %v1580, %v1596
        %v1646 = vcombine.high %v1580, %v1596
        %v1648 = vunpack.c.l.s4 1934713408
        %v1649 = vunpack.c.0.s8 %v1648
        %v1650 = vlaneseq
        %v1651 = vshrl.u32 %v1650, 7
        %v1652 = vsub.s32 %v1649, %v1651
        %v1653 = vrot.slane %v1645, %v1652
        %v1655 = vunpack.c.l.s4 1934713408
        %v1656 = vunpack.c.0.s8 %v1655
        %v1657 = vlaneseq
        %v1658 = vshrl.u32 %v1657, 7
        %v1659 = vsub.s32 %v1656, %v1658
        %v1660 = vrot.slane %v1646, %v1659
        %v1661 = vcombine.low %v1605, %v1637
        %v1662 = vcombine.high %v1605, %v1637
        %v1663 = vcombine.low %v1612, %v1644
        %v1664 = vcombine.high %v1612, %v1644
        %v1665 = vcombine.low %v1621, %v1653
        %v1666 = vcombine.high %v1621, %v1653
        %v1667 = vcombine.low %v1628, %v1660
        %v1668 = vcombine.high %v1628, %v1660
        %v1669 = vcombine.low %v1093, %v1095
        %v1670 = vcombine.high %v1093, %v1095
        %v1672 = vunpack.c.l.s4 1983009808
        %v1673 = vunpack.c.0.s8 %v1672
        %v1674 = vlaneseq
        %v1675 = vshrl.u32 %v1674, 7
        %v1676 = vsub.s32 %v1673, %v1675
        %v1677 = vrot.slane %v1669, %v1676
        %v1679 = vunpack.c.l.s4 1983009808
        %v1680 = vunpack.c.0.s8 %v1679
        %v1681 = vlaneseq
        %v1682 = vshrl.u32 %v1681, 7
        %v1683 = vsub.s32 %v1680, %v1682
        %v1684 = vrot.slane %v1670, %v1683
        %v1685 = vcombine.low %v1094, %v1096
        %v1686 = vcombine.high %v1094, %v1096
        %v1688 = vunpack.c.l.s4 1983009808
        %v1689 = vunpack.c.0.s8 %v1688
        %v1690 = vlaneseq
        %v1691 = vshrl.u32 %v1690, 7
        %v1692 = vsub.s32 %v1689, %v1691
        %v1693 = vrot.slane %v1685, %v1692
        %v1695 = vunpack.c.l.s4 1983009808
        %v1696 = vunpack.c.0.s8 %v1695
        %v1697 = vlaneseq
        %v1698 = vshrl.u32 %v1697, 7
        %v1699 = vsub.s32 %v1696, %v1698
        %v1700 = vrot.slane %v1686, %v1699
        %v1701 = vcombine.low %v1097, %v1099
        %v1702 = vcombine.high %v1097, %v1099
        %v1704 = vunpack.c.l.s4 1983009808
        %v1705 = vunpack.c.0.s8 %v1704
        %v1706 = vlaneseq
        %v1707 = vshrl.u32 %v1706, 7
        %v1708 = vsub.s32 %v1705, %v1707
        %v1709 = vrot.slane %v1701, %v1708
        %v1711 = vunpack.c.l.s4 1983009808
        %v1712 = vunpack.c.0.s8 %v1711
        %v1713 = vlaneseq
        %v1714 = vshrl.u32 %v1713, 7
        %v1715 = vsub.s32 %v1712, %v1714
        %v1716 = vrot.slane %v1702, %v1715
        %v1717 = vcombine.low %v1098, %v1100
        %v1718 = vcombine.high %v1098, %v1100
        %v1720 = vunpack.c.l.s4 1983009808
        %v1721 = vunpack.c.0.s8 %v1720
        %v1722 = vlaneseq
        %v1723 = vshrl.u32 %v1722, 7
        %v1724 = vsub.s32 %v1721, %v1723
        %v1725 = vrot.slane %v1717, %v1724
        %v1727 = vunpack.c.l.s4 1983009808
        %v1728 = vunpack.c.0.s8 %v1727
        %v1729 = vlaneseq
        %v1730 = vshrl.u32 %v1729, 7
        %v1731 = vsub.s32 %v1728, %v1730
        %v1732 = vrot.slane %v1718, %v1731
        %v1733 = vcombine.low %v1677, %v1693
        %v1734 = vcombine.high %v1677, %v1693
        %v1736 = vunpack.c.l.s4 1934713408
        %v1737 = vunpack.c.0.s8 %v1736
        %v1738 = vlaneseq
        %v1739 = vshrl.u32 %v1738, 7
        %v1740 = vsub.s32 %v1737, %v1739
        %v1741 = vrot.slane %v1733, %v1740
        %v1743 = vunpack.c.l.s4 1934713408
        %v1744 = vunpack.c.0.s8 %v1743
        %v1745 = vlaneseq
        %v1746 = vshrl.u32 %v1745, 7
        %v1747 = vsub.s32 %v1744, %v1746
        %v1748 = vrot.slane %v1734, %v1747
        %v1749 = vcombine.low %v1684, %v1700
        %v1750 = vcombine.high %v1684, %v1700
        %v1752 = vunpack.c.l.s4 1934713408
        %v1753 = vunpack.c.0.s8 %v1752
        %v1754 = vlaneseq
        %v1755 = vshrl.u32 %v1754, 7
        %v1756 = vsub.s32 %v1753, %v1755
        %v1757 = vrot.slane %v1749, %v1756
        %v1759 = vunpack.c.l.s4 1934713408
        %v1760 = vunpack.c.0.s8 %v1759
        %v1761 = vlaneseq
        %v1762 = vshrl.u32 %v1761, 7
        %v1763 = vsub.s32 %v1760, %v1762
        %v1764 = vrot.slane %v1750, %v1763
        %v1765 = vcombine.low %v1709, %v1725
        %v1766 = vcombine.high %v1709, %v1725
        %v1768 = vunpack.c.l.s4 1934713408
        %v1769 = vunpack.c.0.s8 %v1768
        %v1770 = vlaneseq
        %v1771 = vshrl.u32 %v1770, 7
        %v1772 = vsub.s32 %v1769, %v1771
        %v1773 = vrot.slane %v1765, %v1772
        %v1775 = vunpack.c.l.s4 1934713408
        %v1776 = vunpack.c.0.s8 %v1775
        %v1777 = vlaneseq
        %v1778 = vshrl.u32 %v1777, 7
        %v1779 = vsub.s32 %v1776, %v1778
        %v1780 = vrot.slane %v1766, %v1779
        %v1781 = vcombine.low %v1716, %v1732
        %v1782 = vcombine.high %v1716, %v1732
        %v1784 = vunpack.c.l.s4 1934713408
        %v1785 = vunpack.c.0.s8 %v1784
        %v1786 = vlaneseq
        %v1787 = vshrl.u32 %v1786, 7
        %v1788 = vsub.s32 %v1785, %v1787
        %v1789 = vrot.slane %v1781, %v1788
        %v1791 = vunpack.c.l.s4 1934713408
        %v1792 = vunpack.c.0.s8 %v1791
        %v1793 = vlaneseq
        %v1794 = vshrl.u32 %v1793, 7
        %v1795 = vsub.s32 %v1792, %v1794
        %v1796 = vrot.slane %v1782, %v1795
        %v1797 = vcombine.low %v1741, %v1773
        %v1798 = vcombine.high %v1741, %v1773
        %v1799 = vcombine.low %v1748, %v1780
        %v1800 = vcombine.high %v1748, %v1780
        %v1801 = vcombine.low %v1757, %v1789
        %v1802 = vcombine.high %v1757, %v1789
        %v1803 = vcombine.low %v1764, %v1796
        %v1804 = vcombine.high %v1764, %v1796
        %v1805 = vcombine.low %v1101, %v1103
        %v1806 = vcombine.high %v1101, %v1103
        %v1808 = vunpack.c.l.s4 1983009808
        %v1809 = vunpack.c.0.s8 %v1808
        %v1810 = vlaneseq
        %v1811 = vshrl.u32 %v1810, 7
        %v1812 = vsub.s32 %v1809, %v1811
        %v1813 = vrot.slane %v1805, %v1812
        %v1815 = vunpack.c.l.s4 1983009808
        %v1816 = vunpack.c.0.s8 %v1815
        %v1817 = vlaneseq
        %v1818 = vshrl.u32 %v1817, 7
        %v1819 = vsub.s32 %v1816, %v1818
        %v1820 = vrot.slane %v1806, %v1819
        %v1821 = vcombine.low %v1102, %v1104
        %v1822 = vcombine.high %v1102, %v1104
        %v1824 = vunpack.c.l.s4 1983009808
        %v1825 = vunpack.c.0.s8 %v1824
        %v1826 = vlaneseq
        %v1827 = vshrl.u32 %v1826, 7
        %v1828 = vsub.s32 %v1825, %v1827
        %v1829 = vrot.slane %v1821, %v1828
        %v1831 = vunpack.c.l.s4 1983009808
        %v1832 = vunpack.c.0.s8 %v1831
        %v1833 = vlaneseq
        %v1834 = vshrl.u32 %v1833, 7
        %v1835 = vsub.s32 %v1832, %v1834
        %v1836 = vrot.slane %v1822, %v1835
        %v1837 = vcombine.low %v1105, %v1107
        %v1838 = vcombine.high %v1105, %v1107
        %v1840 = vunpack.c.l.s4 1983009808
        %v1841 = vunpack.c.0.s8 %v1840
        %v1842 = vlaneseq
        %v1843 = vshrl.u32 %v1842, 7
        %v1844 = vsub.s32 %v1841, %v1843
        %v1845 = vrot.slane %v1837, %v1844
        %v1847 = vunpack.c.l.s4 1983009808
        %v1848 = vunpack.c.0.s8 %v1847
        %v1849 = vlaneseq
        %v1850 = vshrl.u32 %v1849, 7
        %v1851 = vsub.s32 %v1848, %v1850
        %v1852 = vrot.slane %v1838, %v1851
        %v1853 = vcombine.low %v1106, %v1108
        %v1854 = vcombine.high %v1106, %v1108
        %v1856 = vunpack.c.l.s4 1983009808
        %v1857 = vunpack.c.0.s8 %v1856
        %v1858 = vlaneseq
        %v1859 = vshrl.u32 %v1858, 7
        %v1860 = vsub.s32 %v1857, %v1859
        %v1861 = vrot.slane %v1853, %v1860
        %v1863 = vunpack.c.l.s4 1983009808
        %v1864 = vunpack.c.0.s8 %v1863
        %v1865 = vlaneseq
        %v1866 = vshrl.u32 %v1865, 7
        %v1867 = vsub.s32 %v1864, %v1866
        %v1868 = vrot.slane %v1854, %v1867
        %v1869 = vcombine.low %v1813, %v1829
        %v1870 = vcombine.high %v1813, %v1829
        %v1872 = vunpack.c.l.s4 1934713408
        %v1873 = vunpack.c.0.s8 %v1872
        %v1874 = vlaneseq
        %v1875 = vshrl.u32 %v1874, 7
        %v1876 = vsub.s32 %v1873, %v1875
        %v1877 = vrot.slane %v1869, %v1876
        %v1879 = vunpack.c.l.s4 1934713408
        %v1880 = vunpack.c.0.s8 %v1879
        %v1881 = vlaneseq
        %v1882 = vshrl.u32 %v1881, 7
        %v1883 = vsub.s32 %v1880, %v1882
        %v1884 = vrot.slane %v1870, %v1883
        %v1885 = vcombine.low %v1820, %v1836
        %v1886 = vcombine.high %v1820, %v1836
        %v1888 = vunpack.c.l.s4 1934713408
        %v1889 = vunpack.c.0.s8 %v1888
        %v1890 = vlaneseq
        %v1891 = vshrl.u32 %v1890, 7
        %v1892 = vsub.s32 %v1889, %v1891
        %v1893 = vrot.slane %v1885, %v1892
        %v1895 = vunpack.c.l.s4 1934713408
        %v1896 = vunpack.c.0.s8 %v1895
        %v1897 = vlaneseq
        %v1898 = vshrl.u32 %v1897, 7
        %v1899 = vsub.s32 %v1896, %v1898
        %v1900 = vrot.slane %v1886, %v1899
        %v1901 = vcombine.low %v1845, %v1861
        %v1902 = vcombine.high %v1845, %v1861
        %v1904 = vunpack.c.l.s4 1934713408
        %v1905 = vunpack.c.0.s8 %v1904
        %v1906 = vlaneseq
        %v1907 = vshrl.u32 %v1906, 7
        %v1908 = vsub.s32 %v1905, %v1907
        %v1909 = vrot.slane %v1901, %v1908
        %v1911 = vunpack.c.l.s4 1934713408
        %v1912 = vunpack.c.0.s8 %v1911
        %v1913 = vlaneseq
        %v1914 = vshrl.u32 %v1913, 7
        %v1915 = vsub.s32 %v1912, %v1914
        %v1916 = vrot.slane %v1902, %v1915
        %v1917 = vcombine.low %v1852, %v1868
        %v1918 = vcombine.high %v1852, %v1868
        %v1920 = vunpack.c.l.s4 1934713408
        %v1921 = vunpack.c.0.s8 %v1920
        %v1922 = vlaneseq
        %v1923 = vshrl.u32 %v1922, 7
        %v1924 = vsub.s32 %v1921, %v1923
        %v1925 = vrot.slane %v1917, %v1924
        %v1927 = vunpack.c.l.s4 1934713408
        %v1928 = vunpack.c.0.s8 %v1927
        %v1929 = vlaneseq
        %v1930 = vshrl.u32 %v1929, 7
        %v1931 = vsub.s32 %v1928, %v1930
        %v1932 = vrot.slane %v1918, %v1931
        %v1933 = vcombine.low %v1877, %v1909
        %v1934 = vcombine.high %v1877, %v1909
        %v1935 = vcombine.low %v1884, %v1916
        %v1936 = vcombine.high %v1884, %v1916
        %v1937 = vcombine.low %v1893, %v1925
        %v1938 = vcombine.high %v1893, %v1925
        %v1939 = vcombine.low %v1900, %v1932
        %v1940 = vcombine.high %v1900, %v1932
        %v1941 = vcombine.low %v1109, %v1111
        %v1942 = vcombine.high %v1109, %v1111
        %v1944 = vunpack.c.l.s4 1983009808
        %v1945 = vunpack.c.0.s8 %v1944
        %v1946 = vlaneseq
        %v1947 = vshrl.u32 %v1946, 7
        %v1948 = vsub.s32 %v1945, %v1947
        %v1949 = vrot.slane %v1941, %v1948
        %v1951 = vunpack.c.l.s4 1983009808
        %v1952 = vunpack.c.0.s8 %v1951
        %v1953 = vlaneseq
        %v1954 = vshrl.u32 %v1953, 7
        %v1955 = vsub.s32 %v1952, %v1954
        %v1956 = vrot.slane %v1942, %v1955
        %v1957 = vcombine.low %v1110, %v1112
        %v1958 = vcombine.high %v1110, %v1112
        %v1960 = vunpack.c.l.s4 1983009808
        %v1961 = vunpack.c.0.s8 %v1960
        %v1962 = vlaneseq
        %v1963 = vshrl.u32 %v1962, 7
        %v1964 = vsub.s32 %v1961, %v1963
        %v1965 = vrot.slane %v1957, %v1964
        %v1967 = vunpack.c.l.s4 1983009808
        %v1968 = vunpack.c.0.s8 %v1967
        %v1969 = vlaneseq
        %v1970 = vshrl.u32 %v1969, 7
        %v1971 = vsub.s32 %v1968, %v1970
        %v1972 = vrot.slane %v1958, %v1971
        %v1973 = vcombine.low %v1113, %v1115
        %v1974 = vcombine.high %v1113, %v1115
        %v1976 = vunpack.c.l.s4 1983009808
        %v1977 = vunpack.c.0.s8 %v1976
        %v1978 = vlaneseq
        %v1979 = vshrl.u32 %v1978, 7
        %v1980 = vsub.s32 %v1977, %v1979
        %v1981 = vrot.slane %v1973, %v1980
        %v1983 = vunpack.c.l.s4 1983009808
        %v1984 = vunpack.c.0.s8 %v1983
        %v1985 = vlaneseq
        %v1986 = vshrl.u32 %v1985, 7
        %v1987 = vsub.s32 %v1984, %v1986
        %v1988 = vrot.slane %v1974, %v1987
        %v1989 = vcombine.low %v1114, %v1116
        %v1990 = vcombine.high %v1114, %v1116
        %v1992 = vunpack.c.l.s4 1983009808
        %v1993 = vunpack.c.0.s8 %v1992
        %v1994 = vlaneseq
        %v1995 = vshrl.u32 %v1994, 7
        %v1996 = vsub.s32 %v1993, %v1995
        %v1997 = vrot.slane %v1989, %v1996
        %v1999 = vunpack.c.l.s4 1983009808
        %v2000 = vunpack.c.0.s8 %v1999
        %v2001 = vlaneseq
        %v2002 = vshrl.u32 %v2001, 7
        %v2003 = vsub.s32 %v2000, %v2002
        %v2004 = vrot.slane %v1990, %v2003
        %v2005 = vcombine.low %v1949, %v1965
        %v2006 = vcombine.high %v1949, %v1965
        %v2008 = vunpack.c.l.s4 1934713408
        %v2009 = vunpack.c.0.s8 %v2008
        %v2010 = vlaneseq
        %v2011 = vshrl.u32 %v2010, 7
        %v2012 = vsub.s32 %v2009, %v2011
        %v2013 = vrot.slane %v2005, %v2012
        %v2015 = vunpack.c.l.s4 1934713408
        %v2016 = vunpack.c.0.s8 %v2015
        %v2017 = vlaneseq
        %v2018 = vshrl.u32 %v2017, 7
        %v2019 = vsub.s32 %v2016, %v2018
        %v2020 = vrot.slane %v2006, %v2019
        %v2021 = vcombine.low %v1956, %v1972
        %v2022 = vcombine.high %v1956, %v1972
        %v2024 = vunpack.c.l.s4 1934713408
        %v2025 = vunpack.c.0.s8 %v2024
        %v2026 = vlaneseq
        %v2027 = vshrl.u32 %v2026, 7
        %v2028 = vsub.s32 %v2025, %v2027
        %v2029 = vrot.slane %v2021, %v2028
        %v2031 = vunpack.c.l.s4 1934713408
        %v2032 = vunpack.c.0.s8 %v2031
        %v2033 = vlaneseq
        %v2034 = vshrl.u32 %v2033, 7
        %v2035 = vsub.s32 %v2032, %v2034
        %v2036 = vrot.slane %v2022, %v2035
        %v2037 = vcombine.low %v1981, %v1997
        %v2038 = vcombine.high %v1981, %v1997
        %v2040 = vunpack.c.l.s4 1934713408
        %v2041 = vunpack.c.0.s8 %v2040
        %v2042 = vlaneseq
        %v2043 = vshrl.u32 %v2042, 7
        %v2044 = vsub.s32 %v2041, %v2043
        %v2045 = vrot.slane %v2037, %v2044
        %v2047 = vunpack.c.l.s4 1934713408
        %v2048 = vunpack.c.0.s8 %v2047
        %v2049 = vlaneseq
        %v2050 = vshrl.u32 %v2049, 7
        %v2051 = vsub.s32 %v2048, %v2050
        %v2052 = vrot.slane %v2038, %v2051
        %v2053 = vcombine.low %v1988, %v2004
        %v2054 = vcombine.high %v1988, %v2004
        %v2056 = vunpack.c.l.s4 1934713408
        %v2057 = vunpack.c.0.s8 %v2056
        %v2058 = vlaneseq
        %v2059 = vshrl.u32 %v2058, 7
        %v2060 = vsub.s32 %v2057, %v2059
        %v2061 = vrot.slane %v2053, %v2060
        %v2063 = vunpack.c.l.s4 1934713408
        %v2064 = vunpack.c.0.s8 %v2063
        %v2065 = vlaneseq
        %v2066 = vshrl.u32 %v2065, 7
        %v2067 = vsub.s32 %v2064, %v2066
        %v2068 = vrot.slane %v2054, %v2067
        %v2069 = vcombine.low %v2013, %v2045
        %v2070 = vcombine.high %v2013, %v2045
        %v2071 = vcombine.low %v2020, %v2052
        %v2072 = vcombine.high %v2020, %v2052
        %v2073 = vcombine.low %v2029, %v2061
        %v2074 = vcombine.high %v2029, %v2061
        %v2075 = vcombine.low %v2036, %v2068
        %v2076 = vcombine.high %v2036, %v2068
        %v2077 = vcombine.low %v1117, %v1119
        %v2078 = vcombine.high %v1117, %v1119
        %v2080 = vunpack.c.l.s4 1983009808
        %v2081 = vunpack.c.0.s8 %v2080
        %v2082 = vlaneseq
        %v2083 = vshrl.u32 %v2082, 7
        %v2084 = vsub.s32 %v2081, %v2083
        %v2085 = vrot.slane %v2077, %v2084
        %v2087 = vunpack.c.l.s4 1983009808
        %v2088 = vunpack.c.0.s8 %v2087
        %v2089 = vlaneseq
        %v2090 = vshrl.u32 %v2089, 7
        %v2091 = vsub.s32 %v2088, %v2090
        %v2092 = vrot.slane %v2078, %v2091
        %v2093 = vcombine.low %v1118, %v1120
        %v2094 = vcombine.high %v1118, %v1120
        %v2096 = vunpack.c.l.s4 1983009808
        %v2097 = vunpack.c.0.s8 %v2096
        %v2098 = vlaneseq
        %v2099 = vshrl.u32 %v2098, 7
        %v2100 = vsub.s32 %v2097, %v2099
        %v2101 = vrot.slane %v2093, %v2100
        %v2103 = vunpack.c.l.s4 1983009808
        %v2104 = vunpack.c.0.s8 %v2103
        %v2105 = vlaneseq
        %v2106 = vshrl.u32 %v2105, 7
        %v2107 = vsub.s32 %v2104, %v2106
        %v2108 = vrot.slane %v2094, %v2107
        %v2109 = vcombine.low %v1121, %v1123
        %v2110 = vcombine.high %v1121, %v1123
        %v2112 = vunpack.c.l.s4 1983009808
        %v2113 = vunpack.c.0.s8 %v2112
        %v2114 = vlaneseq
        %v2115 = vshrl.u32 %v2114, 7
        %v2116 = vsub.s32 %v2113, %v2115
        %v2117 = vrot.slane %v2109, %v2116
        %v2119 = vunpack.c.l.s4 1983009808
        %v2120 = vunpack.c.0.s8 %v2119
        %v2121 = vlaneseq
        %v2122 = vshrl.u32 %v2121, 7
        %v2123 = vsub.s32 %v2120, %v2122
        %v2124 = vrot.slane %v2110, %v2123
        %v2125 = vcombine.low %v1122, %v1124
        %v2126 = vcombine.high %v1122, %v1124
        %v2128 = vunpack.c.l.s4 1983009808
        %v2129 = vunpack.c.0.s8 %v2128
        %v2130 = vlaneseq
        %v2131 = vshrl.u32 %v2130, 7
        %v2132 = vsub.s32 %v2129, %v2131
        %v2133 = vrot.slane %v2125, %v2132
        %v2135 = vunpack.c.l.s4 1983009808
        %v2136 = vunpack.c.0.s8 %v2135
        %v2137 = vlaneseq
        %v2138 = vshrl.u32 %v2137, 7
        %v2139 = vsub.s32 %v2136, %v2138
        %v2140 = vrot.slane %v2126, %v2139
        %v2141 = vcombine.low %v2085, %v2101
        %v2142 = vcombine.high %v2085, %v2101
        %v2144 = vunpack.c.l.s4 1934713408
        %v2145 = vunpack.c.0.s8 %v2144
        %v2146 = vlaneseq
        %v2147 = vshrl.u32 %v2146, 7
        %v2148 = vsub.s32 %v2145, %v2147
        %v2149 = vrot.slane %v2141, %v2148
        %v2151 = vunpack.c.l.s4 1934713408
        %v2152 = vunpack.c.0.s8 %v2151
        %v2153 = vlaneseq
        %v2154 = vshrl.u32 %v2153, 7
        %v2155 = vsub.s32 %v2152, %v2154
        %v2156 = vrot.slane %v2142, %v2155
        %v2157 = vcombine.low %v2092, %v2108
        %v2158 = vcombine.high %v2092, %v2108
        %v2160 = vunpack.c.l.s4 1934713408
        %v2161 = vunpack.c.0.s8 %v2160
        %v2162 = vlaneseq
        %v2163 = vshrl.u32 %v2162, 7
        %v2164 = vsub.s32 %v2161, %v2163
        %v2165 = vrot.slane %v2157, %v2164
        %v2167 = vunpack.c.l.s4 1934713408
        %v2168 = vunpack.c.0.s8 %v2167
        %v2169 = vlaneseq
        %v2170 = vshrl.u32 %v2169, 7
        %v2171 = vsub.s32 %v2168, %v2170
        %v2172 = vrot.slane %v2158, %v2171
        %v2173 = vcombine.low %v2117, %v2133
        %v2174 = vcombine.high %v2117, %v2133
        %v2176 = vunpack.c.l.s4 1934713408
        %v2177 = vunpack.c.0.s8 %v2176
        %v2178 = vlaneseq
        %v2179 = vshrl.u32 %v2178, 7
        %v2180 = vsub.s32 %v2177, %v2179
        %v2181 = vrot.slane %v2173, %v2180
        %v2183 = vunpack.c.l.s4 1934713408
        %v2184 = vunpack.c.0.s8 %v2183
        %v2185 = vlaneseq
        %v2186 = vshrl.u32 %v2185, 7
        %v2187 = vsub.s32 %v2184, %v2186
        %v2188 = vrot.slane %v2174, %v2187
        %v2189 = vcombine.low %v2124, %v2140
        %v2190 = vcombine.high %v2124, %v2140
        %v2192 = vunpack.c.l.s4 1934713408
        %v2193 = vunpack.c.0.s8 %v2192
        %v2194 = vlaneseq
        %v2195 = vshrl.u32 %v2194, 7
        %v2196 = vsub.s32 %v2193, %v2195
        %v2197 = vrot.slane %v2189, %v2196
        %v2199 = vunpack.c.l.s4 1934713408
        %v2200 = vunpack.c.0.s8 %v2199
        %v2201 = vlaneseq
        %v2202 = vshrl.u32 %v2201, 7
        %v2203 = vsub.s32 %v2200, %v2202
        %v2204 = vrot.slane %v2190, %v2203
        %v2205 = vcombine.low %v2149, %v2181
        %v2206 = vcombine.high %v2149, %v2181
        %v2207 = vcombine.low %v2156, %v2188
        %v2208 = vcombine.high %v2156, %v2188
        %v2209 = vcombine.low %v2165, %v2197
        %v2210 = vcombine.high %v2165, %v2197
        %v2211 = vcombine.low %v2172, %v2204
        %v2212 = vcombine.high %v2172, %v2204
        %2221 = vrot.lane.b32.xlu0 %v1254, 16
        %v2222 = vpop.permute.xlu0 %2221
        %2223 = vrot.lane.b32.xlu0 %v1390, 16
        %v2224 = vpop.permute.xlu0 %2223
        %2225 = vrot.lane.b32.xlu0 %v1526, 16
        %v2226 = vpop.permute.xlu0 %2225
        %2227 = vrot.lane.b32.xlu0 %v1662, 16
        %v2228 = vpop.permute.xlu0 %2227
        %2229 = vrot.lane.b32.xlu0 %v1798, 16
        %v2230 = vpop.permute.xlu0 %2229
        %2231 = vrot.lane.b32.xlu0 %v1934, 16
        %v2232 = vpop.permute.xlu0 %2231
        %2233 = vrot.lane.b32.xlu0 %v2070, 16
        %v2234 = vpop.permute.xlu0 %2233
        %2235 = vrot.lane.b32.xlu0 %v2206, 16
        %v2236 = vpop.permute.xlu0 %2235
        %2253 = vrot.lane.b32.xlu0 %v1255, 32
        %v2254 = vpop.permute.xlu0 %2253
        %2255 = vrot.lane.b32.xlu0 %v1391, 32
        %v2256 = vpop.permute.xlu0 %2255
        %2257 = vrot.lane.b32.xlu0 %v1527, 32
        %v2258 = vpop.permute.xlu0 %2257
        %2259 = vrot.lane.b32.xlu0 %v1663, 32
        %v2260 = vpop.permute.xlu0 %2259
        %2261 = vrot.lane.b32.xlu0 %v1799, 32
        %v2262 = vpop.permute.xlu0 %2261
        %2263 = vrot.lane.b32.xlu0 %v1935, 32
        %v2264 = vpop.permute.xlu0 %2263
        %2265 = vrot.lane.b32.xlu0 %v2071, 32
        %v2266 = vpop.permute.xlu0 %2265
        %2267 = vrot.lane.b32.xlu0 %v2207, 32
        %v2268 = vpop.permute.xlu0 %2267
        %2285 = vrot.lane.b32.xlu0 %v1256, 48
        %v2286 = vpop.permute.xlu0 %2285
        %2287 = vrot.lane.b32.xlu0 %v1392, 48
        %v2288 = vpop.permute.xlu0 %2287
        %2289 = vrot.lane.b32.xlu0 %v1528, 48
        %v2290 = vpop.permute.xlu0 %2289
        %2291 = vrot.lane.b32.xlu0 %v1664, 48
        %v2292 = vpop.permute.xlu0 %2291
        %2293 = vrot.lane.b32.xlu0 %v1800, 48
        %v2294 = vpop.permute.xlu0 %2293
        %2295 = vrot.lane.b32.xlu0 %v1936, 48
        %v2296 = vpop.permute.xlu0 %2295
        %2297 = vrot.lane.b32.xlu0 %v2072, 48
        %v2298 = vpop.permute.xlu0 %2297
        %2299 = vrot.lane.b32.xlu0 %v2208, 48
        %v2300 = vpop.permute.xlu0 %2299
        %2317 = vrot.lane.b32.xlu0 %v1257, 64
        %v2318 = vpop.permute.xlu0 %2317
        %2319 = vrot.lane.b32.xlu0 %v1393, 64
        %v2320 = vpop.permute.xlu0 %2319
        %2321 = vrot.lane.b32.xlu0 %v1529, 64
        %v2322 = vpop.permute.xlu0 %2321
        %2323 = vrot.lane.b32.xlu0 %v1665, 64
        %v2324 = vpop.permute.xlu0 %2323
        %2325 = vrot.lane.b32.xlu0 %v1801, 64
        %v2326 = vpop.permute.xlu0 %2325
        %2327 = vrot.lane.b32.xlu0 %v1937, 64
        %v2328 = vpop.permute.xlu0 %2327
        %2329 = vrot.lane.b32.xlu0 %v2073, 64
        %v2330 = vpop.permute.xlu0 %2329
        %2331 = vrot.lane.b32.xlu0 %v2209, 64
        %v2332 = vpop.permute.xlu0 %2331
        %2349 = vrot.lane.b32.xlu0 %v1258, 80
        %v2350 = vpop.permute.xlu0 %2349
        %2351 = vrot.lane.b32.xlu0 %v1394, 80
        %v2352 = vpop.permute.xlu0 %2351
        %2353 = vrot.lane.b32.xlu0 %v1530, 80
        %v2354 = vpop.permute.xlu0 %2353
        %2355 = vrot.lane.b32.xlu0 %v1666, 80
        %v2356 = vpop.permute.xlu0 %2355
        %2357 = vrot.lane.b32.xlu0 %v1802, 80
        %v2358 = vpop.permute.xlu0 %2357
        %2359 = vrot.lane.b32.xlu0 %v1938, 80
        %v2360 = vpop.permute.xlu0 %2359
        %2361 = vrot.lane.b32.xlu0 %v2074, 80
        %v2362 = vpop.permute.xlu0 %2361
        %2363 = vrot.lane.b32.xlu0 %v2210, 80
        %v2364 = vpop.permute.xlu0 %2363
        %2381 = vrot.lane.b32.xlu0 %v1259, 96
        %v2382 = vpop.permute.xlu0 %2381
        %2383 = vrot.lane.b32.xlu0 %v1395, 96
        %v2384 = vpop.permute.xlu0 %2383
        %2385 = vrot.lane.b32.xlu0 %v1531, 96
        %v2386 = vpop.permute.xlu0 %2385
        %2387 = vrot.lane.b32.xlu0 %v1667, 96
        %v2388 = vpop.permute.xlu0 %2387
        %2389 = vrot.lane.b32.xlu0 %v1803, 96
        %v2390 = vpop.permute.xlu0 %2389
        %2391 = vrot.lane.b32.xlu0 %v1939, 96
        %v2392 = vpop.permute.xlu0 %2391
        %2393 = vrot.lane.b32.xlu0 %v2075, 96
        %v2394 = vpop.permute.xlu0 %2393
        %2395 = vrot.lane.b32.xlu0 %v2211, 96
        %v2396 = vpop.permute.xlu0 %2395
        %2413 = vrot.lane.b32.xlu0 %v1260, 112
        %v2414 = vpop.permute.xlu0 %2413
        %2415 = vrot.lane.b32.xlu0 %v1396, 112
        %v2416 = vpop.permute.xlu0 %2415
        %2417 = vrot.lane.b32.xlu0 %v1532, 112
        %v2418 = vpop.permute.xlu0 %2417
        %2419 = vrot.lane.b32.xlu0 %v1668, 112
        %v2420 = vpop.permute.xlu0 %2419
        %2421 = vrot.lane.b32.xlu0 %v1804, 112
        %v2422 = vpop.permute.xlu0 %2421
        %2423 = vrot.lane.b32.xlu0 %v1940, 112
        %v2424 = vpop.permute.xlu0 %2423
        %2425 = vrot.lane.b32.xlu0 %v2076, 112
        %v2426 = vpop.permute.xlu0 %2425
        %2427 = vrot.lane.b32.xlu0 %v2212, 112
        %v2428 = vpop.permute.xlu0 %2427
        %vm2437 = vcmask 130048
        %v2438 = vsel %vm2437, %v1253, %v2222
        %v2439 = vsel %vm2437, %v1389, %v2224
        %v2440 = vsel %vm2437, %v1525, %v2226
        %v2441 = vsel %vm2437, %v1661, %v2228
        %v2442 = vsel %vm2437, %v1797, %v2230
        %v2443 = vsel %vm2437, %v1933, %v2232
        %v2444 = vsel %vm2437, %v2069, %v2234
        %v2445 = vsel %vm2437, %v2205, %v2236
        %vm2446 = vcmask 261120
        %v2447 = vsel %vm2446, %v2438, %v2254
        %v2448 = vsel %vm2446, %v2439, %v2256
        %v2449 = vsel %vm2446, %v2440, %v2258
        %v2450 = vsel %vm2446, %v2441, %v2260
        %v2451 = vsel %vm2446, %v2442, %v2262
        %v2452 = vsel %vm2446, %v2443, %v2264
        %v2453 = vsel %vm2446, %v2444, %v2266
        %v2454 = vsel %vm2446, %v2445, %v2268
        %vm2455 = vcmask 392192
        %v2456 = vsel %vm2455, %v2447, %v2286
        %v2457 = vsel %vm2455, %v2448, %v2288
        %v2458 = vsel %vm2455, %v2449, %v2290
        %v2459 = vsel %vm2455, %v2450, %v2292
        %v2460 = vsel %vm2455, %v2451, %v2294
        %v2461 = vsel %vm2455, %v2452, %v2296
        %v2462 = vsel %vm2455, %v2453, %v2298
        %v2463 = vsel %vm2455, %v2454, %v2300
        %vm2464 = vcmask 523264
        %v2465 = vsel %vm2464, %v2456, %v2318
        %v2466 = vsel %vm2464, %v2457, %v2320
        %v2467 = vsel %vm2464, %v2458, %v2322
        %v2468 = vsel %vm2464, %v2459, %v2324
        %v2469 = vsel %vm2464, %v2460, %v2326
        %v2470 = vsel %vm2464, %v2461, %v2328
        %v2471 = vsel %vm2464, %v2462, %v2330
        %v2472 = vsel %vm2464, %v2463, %v2332
        %vm2473 = vcmask 654336
        %v2474 = vsel %vm2473, %v2465, %v2350
        %v2475 = vsel %vm2473, %v2466, %v2352
        %v2476 = vsel %vm2473, %v2467, %v2354
        %v2477 = vsel %vm2473, %v2468, %v2356
        %v2478 = vsel %vm2473, %v2469, %v2358
        %v2479 = vsel %vm2473, %v2470, %v2360
        %v2480 = vsel %vm2473, %v2471, %v2362
        %v2481 = vsel %vm2473, %v2472, %v2364
        %vm2482 = vcmask 785408
        %v2483 = vsel %vm2482, %v2474, %v2382
        %v2484 = vsel %vm2482, %v2475, %v2384
        %v2485 = vsel %vm2482, %v2476, %v2386
        %v2486 = vsel %vm2482, %v2477, %v2388
        %v2487 = vsel %vm2482, %v2478, %v2390
        %v2488 = vsel %vm2482, %v2479, %v2392
        %v2489 = vsel %vm2482, %v2480, %v2394
        %v2490 = vsel %vm2482, %v2481, %v2396
        %vm2491 = vcmask 916480
        %v2492 = vsel %vm2491, %v2483, %v2414
        %v2493 = vsel %vm2491, %v2484, %v2416
        %v2494 = vsel %vm2491, %v2485, %v2418
        %v2495 = vsel %vm2491, %v2486, %v2420
        %v2496 = vsel %vm2491, %v2487, %v2422
        %v2497 = vsel %vm2491, %v2488, %v2424
        %v2498 = vsel %vm2491, %v2489, %v2426
        %v2499 = vsel %vm2491, %v2490, %v2428
        %2500 = vst [vmem:[%s253] sm:$0xff] %v2492
        %2501 = vst [vmem:[%s253 + $0x8] sm:$0xff] %v2493
        %2502 = vst [vmem:[%s253 + $0x10] sm:$0xff] %v2494
        %2503 = vst [vmem:[%s253 + $0x18] sm:$0xff] %v2495
        %2504 = vst [vmem:[%s253 + $0x20] sm:$0xff] %v2496
        %2505 = vst [vmem:[%s253 + $0x28] sm:$0xff] %v2497
        %2506 = vst [vmem:[%s253 + $0x30] sm:$0xff] %v2498
        %2507 = vst [vmem:[%s253 + $0x38] sm:$0xff] %v2499
        %v2508 = vld [vmem:[%s3] sm:$0xff]
        %v2509 = vld [vmem:[%s3 + $0x8] sm:$0xff]
        %v2510 = vld [vmem:[%s4] sm:$0x1]
        %v2512 = vlaneseq
        %v2513 = vshrl.u32 %v2512, 7
        %v2514 = vsub.s32 0, %v2513
        %v2515 = vrot.slane %v2510, %v2514
        %v2517 = vsel %vm2437, %v267, 0
        %v2519 = vsel %vm2437, %v268, 0
        %v2521 = vsel %vm2437, %v269, 0
        %v2523 = vsel %vm2437, %v270, 0
        %v2525 = vsel %vm2437, %v271, 0
        %v2527 = vsel %vm2437, %v272, 0
        %v2529 = vsel %vm2437, %v273, 0
        %v2531 = vsel %vm2437, %v274, 0
        %2533 = vmatprep.subr.mxu0 0.0
        %2534 = vmatpush1.msra.mxu0 %v2508
        %2535 = vmatprep.subr.mxu0 0.0
        %2536 = vmatpush1.msra.mxu0 %v2509
        %2537 = vmatprep.subr.mxu0 0.0
        %2538 = vmatpush1.msra.mxu0 0.0
        %2539 = vmatprep.subr.mxu0 0.0
        %2540 = vmatpush1.msra.mxu0 0.0
        %2541 = vmatprep.subr.mxu0 0.0
        %2542 = vmatpush1.msra.mxu0 0.0
        %2543 = vmatprep.subr.mxu0 0.0
        %2544 = vmatpush1.msra.mxu0 0.0
        %2545 = vmatprep.subr.mxu0 0.0
        %2546 = vmatpush1.msra.mxu0 0.0
        %2547 = vmatprep.subr.mxu0 0.0
        %2548 = vmatpush1.msra.mxu0 0.0
        %2549 = vmatprep.subr.mxu0 0.0
        %2550 = vmatpush1.msra.mxu0 0.0
        %2551 = vmatprep.subr.mxu0 0.0
        %2552 = vmatpush1.msra.mxu0 0.0
        %2553 = vmatprep.subr.mxu0 0.0
        %2554 = vmatpush1.msra.mxu0 0.0
        %2555 = vmatprep.subr.mxu0 0.0
        %2556 = vmatpush1.msra.mxu0 0.0
        %2557 = vmatprep.subr.mxu0 0.0
        %2558 = vmatpush1.msra.mxu0 0.0
        %2559 = vmatprep.subr.mxu0 0.0
        %2560 = vmatpush1.msra.mxu0 0.0
        %2561 = vmatprep.subr.mxu0 0.0
        %2562 = vmatpush1.msra.mxu0 0.0
        %2563 = vmatprep.subr.mxu0 0.0
        %2564 = vmatpush1.msra.mxu0 0.0
        %2565 = vmatprep.subr.mxu0 0.0
        %2566 = vmatpush1.msra.mxu0 0.0
        %2567 = vmatprep.subr.mxu0 0.0
        %2568 = vmatpush1.msra.mxu0 0.0
        %2569 = vmatprep.subr.mxu0 0.0
        %2570 = vmatpush1.msra.mxu0 0.0
        %2571 = vmatprep.subr.mxu0 0.0
        %2572 = vmatpush1.msra.mxu0 0.0
        %2573 = vmatprep.subr.mxu0 0.0
        %2574 = vmatpush1.msra.mxu0 0.0
        %2575 = vmatprep.subr.mxu0 0.0
        %2576 = vmatpush1.msra.mxu0 0.0
        %2577 = vmatprep.subr.mxu0 0.0
        %2578 = vmatpush1.msra.mxu0 0.0
        %2579 = vmatprep.subr.mxu0 0.0
        %2580 = vmatpush1.msra.mxu0 0.0
        %2581 = vmatprep.subr.mxu0 0.0
        %2582 = vmatpush1.msra.mxu0 0.0
        %2583 = vmatprep.subr.mxu0 0.0
        %2584 = vmatpush1.msra.mxu0 0.0
        %2585 = vmatprep.subr.mxu0 0.0
        %2586 = vmatpush1.msra.mxu0 0.0
        %2587 = vmatprep.subr.mxu0 0.0
        %2588 = vmatpush1.msra.mxu0 0.0
        %2589 = vmatprep.subr.mxu0 0.0
        %2590 = vmatpush1.msra.mxu0 0.0
        %2591 = vmatprep.subr.mxu0 0.0
        %2592 = vmatpush1.msra.mxu0 0.0
        %2593 = vmatprep.subr.mxu0 0.0
        %2594 = vmatpush1.msra.mxu0 0.0
        %2595 = vmatprep.subr.mxu0 0.0
        %2596 = vmatpush1.msra.mxu0 0.0
        %2597 = vmatprep.mubr.f32.mxu0 0.0
        %2598 = vmatmul.mubr.f32.gmra.mrb[0].mxu0 %v2517
        %v2599 = vpop.f32.mrb[0].mxu0
        %v2600 = vadd.f32 %v2515, %v2599
        %v2601 = vpop.f32.mrb[0].mxu0
        %2602 = vmatprep.mubr.f32.mxu0 0.0
        %2603 = vmatmul.mubr.f32.gmra.mrb[0].mxu0 %v2519
        %v2604 = vpop.f32.mrb[0].mxu0
        %v2605 = vadd.f32 %v2515, %v2604
        %v2606 = vpop.f32.mrb[0].mxu0
        %2607 = vmatprep.mubr.f32.mxu0 0.0
        %2608 = vmatmul.mubr.f32.gmra.mrb[0].mxu0 %v2521
        %v2609 = vpop.f32.mrb[0].mxu0
        %v2610 = vadd.f32 %v2515, %v2609
        %v2611 = vpop.f32.mrb[0].mxu0
        %2612 = vmatprep.mubr.f32.mxu0 0.0
        %2613 = vmatmul.mubr.f32.gmra.mrb[0].mxu0 %v2523
        %v2614 = vpop.f32.mrb[0].mxu0
        %v2615 = vadd.f32 %v2515, %v2614
        %v2616 = vpop.f32.mrb[0].mxu0
        %2617 = vmatprep.mubr.f32.mxu0 0.0
        %2618 = vmatmul.mubr.f32.gmra.mrb[0].mxu0 %v2525
        %v2619 = vpop.f32.mrb[0].mxu0
        %v2620 = vadd.f32 %v2515, %v2619
        %v2621 = vpop.f32.mrb[0].mxu0
        %2622 = vmatprep.mubr.f32.mxu0 0.0
        %2623 = vmatmul.mubr.f32.gmra.mrb[0].mxu0 %v2527
        %v2624 = vpop.f32.mrb[0].mxu0
        %v2625 = vadd.f32 %v2515, %v2624
        %v2626 = vpop.f32.mrb[0].mxu0
        %2627 = vmatprep.mubr.f32.mxu0 0.0
        %2628 = vmatmul.mubr.f32.gmra.mrb[0].mxu0 %v2529
        %v2629 = vpop.f32.mrb[0].mxu0
        %v2630 = vadd.f32 %v2515, %v2629
        %v2631 = vpop.f32.mrb[0].mxu0
        %2632 = vmatprep.mubr.f32.mxu0 0.0
        %2633 = vmatmul.mubr.f32.gmra.mrb[0].mxu0 %v2531
        %v2634 = vpop.f32.mrb[0].mxu0
        %v2635 = vadd.f32 %v2515, %v2634
        %v2636 = vpop.f32.mrb[0].mxu0
        %2637 = vdwg.mxu0
        %vm2638 = vcmask 64512
        %2639 = vst.msk [vmem:[%s264] sm:$0xff] %vm2638, %v2600
        %2640 = vst.msk [vmem:[%s264 + $0x8] sm:$0xff] %vm2638, %v2605
        %2641 = vst.msk [vmem:[%s264 + $0x10] sm:$0xff] %vm2638, %v2610
        %2642 = vst.msk [vmem:[%s264 + $0x18] sm:$0xff] %vm2638, %v2615
        %2643 = vst.msk [vmem:[%s264 + $0x20] sm:$0xff] %vm2638, %v2620
        %2644 = vst.msk [vmem:[%s264 + $0x28] sm:$0xff] %vm2638, %v2625
        %2645 = vst.msk [vmem:[%s264 + $0x30] sm:$0xff] %vm2638, %v2630
        %2646 = vst.msk [vmem:[%s264 + $0x38] sm:$0xff] %vm2638, %v2635
        %s2647 = smul.u32 8, %s21
        %p2648 = scmp.lt.s32.totalorder %s2647, 31
        %s2649 = scalar_select %p2648, %s2647, 31
        %s2650 = smul.addr %s2649, 8
        %s2651 = scalar_lea.vmem %s5, %s2650
        %s2652 = sand.u32 %s165, 1
        %s2653 = scalar_lea.sflag [#allocation3], %s2652
        %s2654 = sand.u32 %s165, 1
        %s2655 = smul.addr %s2654, 64
        %s2656 = scalar_lea.vmem [#allocation2], %s2655
        // Predicated region
        $region41: #{tpu_custom_call.1} parent=39 // pred_check
          %p2657 = pneg %p149
        $region42: #{tpu_custom_call.1} parent=39 // pred_check_branch
          %2659 = sbr.rel (%p2657) target = $region44
        $region43: #{tpu_custom_call.1} parent=39 // pred_region
          %s2660 = smul.u32 8, %s21
        $region44: #{tpu_custom_call.1} parent=39 // pred_fallthru
          _
        // Predicated region
        $region45: #{tpu_custom_call.1} parent=39 // pred_check
          %p2661 = pneg %p175
        $region46: #{tpu_custom_call.1} parent=39 // pred_check_branch
          %2663 = sbr.rel (%p2661) target = $region48
        $region47: #{tpu_custom_call.1} parent=39 // pred_region
          %s2664 = smul.u32 8, %s21
          %s2666 = ssub.s32 1024, 1024
          %2667 = vsyncadd %s2653, %s2666
          %s2668 = smul.addr %s2664, 128
          %s2669 = scalar_lea.hbm %s6, %s2668
          %s2670 = sshll.u32 %s2656, 4
          %s2671 = int_to_ptr.vmem [resolvable:$true] %s2670
          %2676 = dma.vmem_to_hbm [thread:$0]  %s2671, 1024, %s2669, %s2653, 128, 128, 8
        $region48: #{tpu_custom_call.1} parent=39 // pred_fallthru
          _
      $region40: #{tpu_custom_call.1} parent=5 // pred_fallthru
        _
      %p2677 = scmp.le.s32.totalorder 2, %s16
      // Predicated region
      $region49: #{tpu_custom_call.1} parent=5 // pred_check
        %p2678 = pneg %p2677
      $region50: #{tpu_custom_call.1} parent=5 // pred_check_branch
        %2680 = sbr.rel (%p2678) target = $region52
      $region51: #{tpu_custom_call.1} parent=5 // pred_region
        %s2681 = ssub.s32 %s16, 2
        // Predicated region
        $region53: #{tpu_custom_call.1} parent=51 // pred_check
          %p2682 = pneg %p155
        $region54: #{tpu_custom_call.1} parent=51 // pred_check_branch
          %2684 = sbr.rel (%p2682) target = $region56
        $region55: #{tpu_custom_call.1} parent=51 // pred_region
          %s2685 = smul.u32 8, %s22
          %p2686 = scmp.lt.s32.totalorder %s2685, 31
          %s2687 = scalar_select %p2686, %s2685, 31
          %s2688 = smul.addr %s2687, 8
          %s2689 = scalar_lea.vmem %s5, %s2688
        $region56: #{tpu_custom_call.1} parent=51 // pred_fallthru
          _
        // Predicated region
        $region57: #{tpu_custom_call.1} parent=51 // pred_check
          %p2690 = pneg %p181
        $region58: #{tpu_custom_call.1} parent=51 // pred_check_branch
          %2692 = sbr.rel (%p2690) target = $region60
        $region59: #{tpu_custom_call.1} parent=51 // pred_region
          %s2693 = sand.u32 %s166, 1
          %s2694 = scalar_lea.sflag [#allocation3], %s2693
          %s2695 = sand.u32 %s166, 1
          %s2696 = smul.addr %s2695, 64
          %s2697 = scalar_lea.vmem [#allocation2], %s2696
          %2698 = dma.done %s2694, 1024
        $region60: #{tpu_custom_call.1} parent=51 // pred_fallthru
          _
      $region52: #{tpu_custom_call.1} parent=5 // pred_fallthru
        _
    $region6: #{tpu_custom_call.1} parent=1 // loop_footer
      %s20 = sadd.s32 1, %s16
    $region7: #{tpu_custom_call.1} parent=1 // loop_footer_branch
      %15 = sbr.rel target = $region3
    $region8: #{tpu_custom_call.1} parent=1 // loop_exit
      _
    %2699 = vsyncpa [#allocation3], 1
    %s2700 = scalar_lea.sflag [#allocation3], 1
    %2701 = vsyncpa %s2700, 1

</llo_original>
